<compile_context>
chip_gen: v6e
topology: v6e:2x2x1
jax: 0.10.0
libtpu: 0.0.40
codegen_flags: <defaults>
</compile_context>

<pallas_src>
import jax
import jax.numpy as jnp
from jax.experimental import pallas as pl
from jax.experimental.pallas import tpu as pltpu

# ---------------------------------------------------------------------------
# Config (stand-ins for FLAGS.feat_c_R / FLAGS.R_c)
# ---------------------------------------------------------------------------
FEAT_C_R = 32      # FLAGS.feat_c_R  (input feature channels)
R_C = 6            # FLAGS.R_c       (output rotation dims)
N_PTS = 16         # number of points (W dim of the Conv1d input)
BATCH = 2

C1, C2, C3 = 1024, 256, 256
OUT_PAD = 128      # lane-dense padded output width (>= R_C)
BN_EPS = 1e-5

# K-chunk width for the fused conv1->conv2 chain. 256 matches the 256x256 MXUs
# on v6e/v7x; prefer 128 when targeting v5e (4x 128x128 MXUs).
CONV12_CHUNK = 256


# ---------------------------------------------------------------------------
# Pallas kernel: the whole forward pass in one fused invocation.
# ---------------------------------------------------------------------------
def rot_green_kernel(x_ref, w1_ref, b1_ref, w2_hbm, b2_ref,
                     w3_ref, b3_ref, w4_ref, b4_ref, o_ref,
                     w2_vmem, w2_sem):
    # Kick off the w2 DMA immediately so it overlaps the transpose + first
    # conv1 chunk; we only need w2 at the first conv2 accumulation below.
    w2_copy = pltpu.make_async_copy(w2_hbm, w2_vmem, w2_sem)
    w2_copy.start()

    B, F, N = x_ref.shape                      # (B, feat_c_R, N_pts) -- NCW
    M = B * N

    # NCW -> (B*N, F): one fused swapaxes + layout-free reshape (16 % 8 == 0).
    xm = jnp.swapaxes(x_ref[...], 1, 2).reshape(M, F).astype(jnp.bfloat16)

    # conv1(+bn1)+relu fused into conv2(+bn2) via K-chunking: one 256-wide
    # h1 chunk live at a time, conv2 accumulated in f32.
    acc = jnp.zeros((M, C2), jnp.float32)
    for c in range(C1 // CONV12_CHUNK):
        lo = c * CONV12_CHUNK
        hi = lo + CONV12_CHUNK
        h1c = jnp.dot(xm, w1_ref[:, lo:hi],
                      preferred_element_type=jnp.float32) + b1_ref[:, lo:hi]
        h1c = jnp.maximum(h1c, 0.0).astype(jnp.bfloat16)
        if c == 0:
            w2_copy.wait()                     # first use of w2
        acc = acc + jnp.dot(h1c, w2_vmem[lo:hi, :],
                            preferred_element_type=jnp.float32)
    h2 = jnp.maximum(acc + b2_ref[...], 0.0)   # (M, 256) f32

    # torch.max(x, 2, keepdim=True)[0]: per-batch max over the point dim.
    m = jnp.max(h2.reshape(B, N, C2), axis=1)  # (B, 256)

    # conv3 (+ folded bn3) + relu                 -> (B, 256)
    h3 = jnp.dot(m.astype(jnp.bfloat16), w3_ref[...],
                 preferred_element_type=jnp.float32) + b3_ref[...]
    h3 = jnp.maximum(h3, 0.0)

    # drop1: nn.Dropout(0.2) -- identity in eval mode.
    # TODO(synk): training-mode dropout (pltpu.prng_* + mask) not implemented.

    # conv4 (plain conv, no BN), padded to 128 lanes -> unmasked lane-dense store
    out = jnp.dot(h3.astype(jnp.bfloat16), w4_ref[...],
                  preferred_element_type=jnp.float32) + b4_ref[...]
    o_ref[...] = out.astype(o_ref.dtype)


@jax.jit
def rot_green_forward(x_ncw, params):
    """x_ncw: (B, FEAT_C_R, N_PTS) float32, matching the PyTorch Conv1d layout."""
    B = x_ncw.shape[0]
    (w1, b1, w2, b2, w3, b3, w4, b4) = params

    def vmem():
        return pl.BlockSpec(memory_space=pltpu.MemorySpace.VMEM)

    # Static cost hint: ~19 MFLOP, ~0.8 MB of traffic, no transcendentals.
    flops = 2 * (B * N_PTS) * (FEAT_C_R * C1 + C1 * C2) \
        + 2 * B * (C2 * C3 + C3 * OUT_PAD)
    bytes_accessed = sum(int(a.size) * a.dtype.itemsize
                         for a in (x_ncw, w1, b1, w2, b2, w3, b3, w4, b4)) \
        + B * OUT_PAD * 4

    out_pad = pl.pallas_call(
        rot_green_kernel,
        out_shape=jax.ShapeDtypeStruct((B, OUT_PAD), jnp.float32),
        in_specs=[vmem(), vmem(), vmem(),
                  pl.BlockSpec(memory_space=pl.ANY),     # w2: manual DMA
                  vmem(), vmem(), vmem(), vmem(), vmem()],
        out_specs=vmem(),
        scratch_shapes=[pltpu.VMEM((C1, C2), jnp.bfloat16),   # w2 landing buffer
                        pltpu.SemaphoreType.DMA(())],
        cost_estimate=pl.CostEstimate(flops=flops, transcendentals=0,
                                      bytes_accessed=bytes_accessed),
    )(x_ncw, w1, b1, w2, b2, w3, b3, w4, b4)

    # drop the zero-padded lanes (squeeze(2) is handled by the (B, R_C) shape)
    return out_pad[:, :R_C]


# ---------------------------------------------------------------------------
# Deterministic parameter construction (synthetic, BN folded into convs)
# ---------------------------------------------------------------------------
def make_params(key):
    ks = jax.random.split(key, 16)

    def conv(kw, kb, cin, cout, scale=0.05):
        # stored as (cin, cout) == transpose of PyTorch Conv1d weight (cout, cin, 1)
        w = scale * jax.random.normal(kw, (cin, cout), jnp.float32)
        b = scale * jax.random.normal(kb, (cout,), jnp.float32)
        return w, b

    def bn(k, c):
        kg, kb, km, kv = jax.random.split(k, 4)
        gamma = 1.0 + 0.1 * jax.random.normal(kg, (c,), jnp.float32)
        beta = 0.1 * jax.random.normal(kb, (c,), jnp.float32)
        mean = 0.1 * jax.random.normal(km, (c,), jnp.float32)
        var = jnp.abs(1.0 + 0.1 * jax.random.normal(kv, (c,), jnp.float32))
        return gamma, beta, mean, var

    def fold(w, b, bn_params):
        gamma, beta, mean, var = bn_params
        s = gamma / jnp.sqrt(var + BN_EPS)            # per-output-channel scale
        return w * s[None, :], ((b - mean) * s + beta)[None, :]   # bias as (1, C)

    w1, b1 = conv(ks[0], ks[1], FEAT_C_R, C1)
    w2, b2 = conv(ks[2], ks[3], C1, C2)
    w3, b3 = conv(ks[4], ks[5], C2, C3)
    w4, b4 = conv(ks[6], ks[7], C3, R_C)

    w1, b1 = fold(w1, b1, bn(ks[8], C1))
    w2, b2 = fold(w2, b2, bn(ks[9], C2))
    w3, b3 = fold(w3, b3, bn(ks[10], C3))

    # pad the final projection to a lane-dense width; extra columns are zero.
    w4p = jnp.zeros((C3, OUT_PAD), jnp.float32).at[:, :R_C].set(w4)
    b4p = jnp.zeros((1, OUT_PAD), jnp.float32).at[:, :R_C].set(b4[None, :])

    bf = lambda w: w.astype(jnp.bfloat16)             # weights in bf16, biases f32
    return (bf(w1), b1, bf(w2), b2, bf(w3), b3, bf(w4p), b4p)


def reference_forward(x_ncw, params):
    """Pure-JAX reference mirroring the PyTorch forward (eval mode, bf16 weights)."""
    (w1, b1, w2, b2, w3, b3, w4, b4) = params
    hi = jax.lax.Precision.HIGHEST
    f32 = lambda a: a.astype(jnp.float32)
    bf = lambda a: a.astype(jnp.bfloat16).astype(jnp.float32)

    x = bf(jnp.transpose(x_ncw, (0, 2, 1)))                                 # (B, N, f)
    h1 = jax.nn.relu(jnp.einsum("bnf,fc->bnc", x, f32(w1), precision=hi) + b1)
    h2 = jax.nn.relu(jnp.einsum("bnf,fc->bnc", bf(h1), f32(w2), precision=hi) + b2)
    m = jnp.max(h2, axis=1, keepdims=True)                                  # (B, 1, 256)
    h3 = jax.nn.relu(jnp.einsum("bnf,fc->bnc", bf(m), f32(w3), precision=hi) + b3)
    out = jnp.einsum("bnf,fc->bnc", bf(h3), f32(w4), precision=hi) + b4
    return out[:, 0, :R_C]                                                  # (B, R_C)


if __name__ == "__main__":
    key = jax.random.PRNGKey(0)
    kx, kp = jax.random.split(key)

    x = jax.random.normal(kx, (BATCH, FEAT_C_R, N_PTS), jnp.float32)
    params = make_params(kp)

    out = jax.block_until_ready(rot_green_forward(x, params))
    ref = reference_forward(x, params)

    assert out.shape == (BATCH, R_C), out.shape
    max_err = float(jnp.max(jnp.abs(out - ref)))
    assert jnp.allclose(out, ref, atol=2e-2, rtol=2e-2), max_err

    print("KERNEL_OK")
</pallas_src>

<mosaic_0001>
module attributes {stable_mosaic.version = 11 : i64} {
  func.func @rot_green_kernel(%arg0: memref<2x32x16xf32, #tpu.memory_space<vmem>>, %arg1: memref<32x1024xbf16, #tpu.memory_space<vmem>>, %arg2: memref<1x1024xf32, #tpu.memory_space<vmem>>, %arg3: memref<1024x256xbf16, #tpu.memory_space<any>>, %arg4: memref<1x256xf32, #tpu.memory_space<vmem>>, %arg5: memref<256x256xbf16, #tpu.memory_space<vmem>>, %arg6: memref<1x256xf32, #tpu.memory_space<vmem>>, %arg7: memref<256x128xbf16, #tpu.memory_space<vmem>>, %arg8: memref<1x128xf32, #tpu.memory_space<vmem>>, %arg9: memref<2x128xf32, #tpu.memory_space<vmem>>, %arg10: memref<1024x256xbf16, #tpu.memory_space<vmem>>, %arg11: memref<!tpu.dma_semaphore, #tpu.memory_space<semaphore_mem>>) attributes {dimension_semantics = [], scalar_prefetch = 0 : i64, scratch_operands = 2 : i64, tpu.core_type = #tpu.core_type<tc>} {
    tpu.enqueue_dma source(%arg3 : memref<1024x256xbf16, #tpu.memory_space<any>>) target(%arg10 : memref<1024x256xbf16, #tpu.memory_space<vmem>>) target_semaphore(%arg11 : memref<!tpu.dma_semaphore, #tpu.memory_space<semaphore_mem>>)
    %c0 = arith.constant 0 : index
    %c0_0 = arith.constant 0 : index
    %c0_1 = arith.constant 0 : index
    %0 = vector.load %arg0[%c0, %c0_0, %c0_1] : memref<2x32x16xf32, #tpu.memory_space<vmem>>, vector<2x32x16xf32>
    %1 = tpu.transpose %0, [0, 2, 1] : vector<2x32x16xf32> -> vector<2x16x32xf32>
    %2 = vector.shape_cast %1 : vector<2x16x32xf32> to vector<32x32xf32>
    %3 = arith.truncf %2 : vector<32x32xf32> to vector<32x32xbf16>
    %cst = arith.constant 0.000000e+00 : f32
    %4 = vector.broadcast %cst : f32 to vector<32x256xf32>
    %c0_2 = arith.constant 0 : index
    %c0_3 = arith.constant 0 : index
    %5 = vector.load %arg1[%c0_2, %c0_3] : memref<32x1024xbf16, #tpu.memory_space<vmem>>, vector<32x256xbf16>
    %cst_4 = arith.constant dense<0.000000e+00> : vector<32x256xf32>
    %6 = tpu.matmul %3, %5, %cst_4 {dimension_numbers = #tpu.dot_dimension_numbers<[1], [0], [0], [1], [0, 0, 1, 1], [], []>} : vector<32x32xbf16>, vector<32x256xbf16>, vector<32x256xf32> -> vector<32x256xf32>
    %c0_5 = arith.constant 0 : index
    %c0_6 = arith.constant 0 : index
    %7 = vector.load %arg2[%c0_5, %c0_6] : memref<1x1024xf32, #tpu.memory_space<vmem>>, vector<1x256xf32>
    %8 = vector.broadcast %7 : vector<1x256xf32> to vector<32x256xf32>
    %9 = arith.addf %6, %8 : vector<32x256xf32>
    %cst_7 = arith.constant 0.000000e+00 : f32
    %10 = vector.broadcast %cst_7 : f32 to vector<32x256xf32>
    %11 = arith.maximumf %9, %10 : vector<32x256xf32>
    %12 = arith.truncf %11 : vector<32x256xf32> to vector<32x256xbf16>
    tpu.wait_dma2 semaphore(%arg11 : memref<!tpu.dma_semaphore, #tpu.memory_space<semaphore_mem>>) src(%arg3 : memref<1024x256xbf16, #tpu.memory_space<any>>) dst(%arg10 : memref<1024x256xbf16, #tpu.memory_space<vmem>>)
    %c0_8 = arith.constant 0 : index
    %c0_9 = arith.constant 0 : index
    %13 = vector.load %arg10[%c0_8, %c0_9] : memref<1024x256xbf16, #tpu.memory_space<vmem>>, vector<256x256xbf16>
    %cst_10 = arith.constant dense<0.000000e+00> : vector<32x256xf32>
    %14 = tpu.matmul %12, %13, %cst_10 {dimension_numbers = #tpu.dot_dimension_numbers<[1], [0], [0], [1], [0, 0, 1, 1], [], []>} : vector<32x256xbf16>, vector<256x256xbf16>, vector<32x256xf32> -> vector<32x256xf32>
    %15 = arith.addf %4, %14 : vector<32x256xf32>
    %c0_11 = arith.constant 0 : index
    %c256 = arith.constant 256 : index
    %16 = vector.load %arg1[%c0_11, %c256] : memref<32x1024xbf16, #tpu.memory_space<vmem>>, vector<32x256xbf16>
    %cst_12 = arith.constant dense<0.000000e+00> : vector<32x256xf32>
    %17 = tpu.matmul %3, %16, %cst_12 {dimension_numbers = #tpu.dot_dimension_numbers<[1], [0], [0], [1], [0, 0, 1, 1], [], []>} : vector<32x32xbf16>, vector<32x256xbf16>, vector<32x256xf32> -> vector<32x256xf32>
    %c0_13 = arith.constant 0 : index
    %c256_14 = arith.constant 256 : index
    %18 = vector.load %arg2[%c0_13, %c256_14] : memref<1x1024xf32, #tpu.memory_space<vmem>>, vector<1x256xf32>
    %19 = vector.broadcast %18 : vector<1x256xf32> to vector<32x256xf32>
    %20 = arith.addf %17, %19 : vector<32x256xf32>
    %cst_15 = arith.constant 0.000000e+00 : f32
    %21 = vector.broadcast %cst_15 : f32 to vector<32x256xf32>
    %22 = arith.maximumf %20, %21 : vector<32x256xf32>
    %23 = arith.truncf %22 : vector<32x256xf32> to vector<32x256xbf16>
    %c256_16 = arith.constant 256 : index
    %c0_17 = arith.constant 0 : index
    %24 = vector.load %arg10[%c256_16, %c0_17] : memref<1024x256xbf16, #tpu.memory_space<vmem>>, vector<256x256xbf16>
    %cst_18 = arith.constant dense<0.000000e+00> : vector<32x256xf32>
    %25 = tpu.matmul %23, %24, %cst_18 {dimension_numbers = #tpu.dot_dimension_numbers<[1], [0], [0], [1], [0, 0, 1, 1], [], []>} : vector<32x256xbf16>, vector<256x256xbf16>, vector<32x256xf32> -> vector<32x256xf32>
    %26 = arith.addf %15, %25 : vector<32x256xf32>
    %c0_19 = arith.constant 0 : index
    %c512 = arith.constant 512 : index
    %27 = vector.load %arg1[%c0_19, %c512] : memref<32x1024xbf16, #tpu.memory_space<vmem>>, vector<32x256xbf16>
    %cst_20 = arith.constant dense<0.000000e+00> : vector<32x256xf32>
    %28 = tpu.matmul %3, %27, %cst_20 {dimension_numbers = #tpu.dot_dimension_numbers<[1], [0], [0], [1], [0, 0, 1, 1], [], []>} : vector<32x32xbf16>, vector<32x256xbf16>, vector<32x256xf32> -> vector<32x256xf32>
    %c0_21 = arith.constant 0 : index
    %c512_22 = arith.constant 512 : index
    %29 = vector.load %arg2[%c0_21, %c512_22] : memref<1x1024xf32, #tpu.memory_space<vmem>>, vector<1x256xf32>
    %30 = vector.broadcast %29 : vector<1x256xf32> to vector<32x256xf32>
    %31 = arith.addf %28, %30 : vector<32x256xf32>
    %cst_23 = arith.constant 0.000000e+00 : f32
    %32 = vector.broadcast %cst_23 : f32 to vector<32x256xf32>
    %33 = arith.maximumf %31, %32 : vector<32x256xf32>
    %34 = arith.truncf %33 : vector<32x256xf32> to vector<32x256xbf16>
    %c512_24 = arith.constant 512 : index
    %c0_25 = arith.constant 0 : index
    %35 = vector.load %arg10[%c512_24, %c0_25] : memref<1024x256xbf16, #tpu.memory_space<vmem>>, vector<256x256xbf16>
    %cst_26 = arith.constant dense<0.000000e+00> : vector<32x256xf32>
    %36 = tpu.matmul %34, %35, %cst_26 {dimension_numbers = #tpu.dot_dimension_numbers<[1], [0], [0], [1], [0, 0, 1, 1], [], []>} : vector<32x256xbf16>, vector<256x256xbf16>, vector<32x256xf32> -> vector<32x256xf32>
    %37 = arith.addf %26, %36 : vector<32x256xf32>
    %c0_27 = arith.constant 0 : index
    %c768 = arith.constant 768 : index
    %38 = vector.load %arg1[%c0_27, %c768] : memref<32x1024xbf16, #tpu.memory_space<vmem>>, vector<32x256xbf16>
    %cst_28 = arith.constant dense<0.000000e+00> : vector<32x256xf32>
    %39 = tpu.matmul %3, %38, %cst_28 {dimension_numbers = #tpu.dot_dimension_numbers<[1], [0], [0], [1], [0, 0, 1, 1], [], []>} : vector<32x32xbf16>, vector<32x256xbf16>, vector<32x256xf32> -> vector<32x256xf32>
    %c0_29 = arith.constant 0 : index
    %c768_30 = arith.constant 768 : index
    %40 = vector.load %arg2[%c0_29, %c768_30] : memref<1x1024xf32, #tpu.memory_space<vmem>>, vector<1x256xf32>
    %41 = vector.broadcast %40 : vector<1x256xf32> to vector<32x256xf32>
    %42 = arith.addf %39, %41 : vector<32x256xf32>
    %cst_31 = arith.constant 0.000000e+00 : f32
    %43 = vector.broadcast %cst_31 : f32 to vector<32x256xf32>
    %44 = arith.maximumf %42, %43 : vector<32x256xf32>
    %45 = arith.truncf %44 : vector<32x256xf32> to vector<32x256xbf16>
    %c768_32 = arith.constant 768 : index
    %c0_33 = arith.constant 0 : index
    %46 = vector.load %arg10[%c768_32, %c0_33] : memref<1024x256xbf16, #tpu.memory_space<vmem>>, vector<256x256xbf16>
    %cst_34 = arith.constant dense<0.000000e+00> : vector<32x256xf32>
    %47 = tpu.matmul %45, %46, %cst_34 {dimension_numbers = #tpu.dot_dimension_numbers<[1], [0], [0], [1], [0, 0, 1, 1], [], []>} : vector<32x256xbf16>, vector<256x256xbf16>, vector<32x256xf32> -> vector<32x256xf32>
    %48 = arith.addf %37, %47 : vector<32x256xf32>
    %c0_35 = arith.constant 0 : index
    %c0_36 = arith.constant 0 : index
    %49 = vector.load %arg4[%c0_35, %c0_36] : memref<1x256xf32, #tpu.memory_space<vmem>>, vector<1x256xf32>
    %50 = vector.broadcast %49 : vector<1x256xf32> to vector<32x256xf32>
    %51 = arith.addf %48, %50 : vector<32x256xf32>
    %cst_37 = arith.constant 0.000000e+00 : f32
    %52 = vector.broadcast %cst_37 : f32 to vector<32x256xf32>
    %53 = arith.maximumf %51, %52 : vector<32x256xf32>
    %54 = vector.shape_cast %53 : vector<32x256xf32> to vector<2x16x256xf32>
    %cst_38 = arith.constant dense<0xFF800000> : vector<2x256xf32>
    %55 = vector.multi_reduction <maximumf>, %54, %cst_38 [1] : vector<2x16x256xf32> to vector<2x256xf32>
    %56 = arith.truncf %55 : vector<2x256xf32> to vector<2x256xbf16>
    %c0_39 = arith.constant 0 : index
    %c0_40 = arith.constant 0 : index
    %57 = vector.load %arg5[%c0_39, %c0_40] : memref<256x256xbf16, #tpu.memory_space<vmem>>, vector<256x256xbf16>
    %cst_41 = arith.constant dense<0.000000e+00> : vector<2x256xf32>
    %58 = tpu.matmul %56, %57, %cst_41 {dimension_numbers = #tpu.dot_dimension_numbers<[1], [0], [0], [1], [0, 0, 1, 1], [], []>} : vector<2x256xbf16>, vector<256x256xbf16>, vector<2x256xf32> -> vector<2x256xf32>
    %c0_42 = arith.constant 0 : index
    %c0_43 = arith.constant 0 : index
    %59 = vector.load %arg6[%c0_42, %c0_43] : memref<1x256xf32, #tpu.memory_space<vmem>>, vector<1x256xf32>
    %60 = vector.broadcast %59 : vector<1x256xf32> to vector<2x256xf32>
    %61 = arith.addf %58, %60 : vector<2x256xf32>
    %cst_44 = arith.constant 0.000000e+00 : f32
    %62 = vector.broadcast %cst_44 : f32 to vector<2x256xf32>
    %63 = arith.maximumf %61, %62 : vector<2x256xf32>
    %64 = arith.truncf %63 : vector<2x256xf32> to vector<2x256xbf16>
    %c0_45 = arith.constant 0 : index
    %c0_46 = arith.constant 0 : index
    %65 = vector.load %arg7[%c0_45, %c0_46] : memref<256x128xbf16, #tpu.memory_space<vmem>>, vector<256x128xbf16>
    %cst_47 = arith.constant dense<0.000000e+00> : vector<2x128xf32>
    %66 = tpu.matmul %64, %65, %cst_47 {dimension_numbers = #tpu.dot_dimension_numbers<[1], [0], [0], [1], [0, 0, 1, 1], [], []>} : vector<2x256xbf16>, vector<256x128xbf16>, vector<2x128xf32> -> vector<2x128xf32>
    %c0_48 = arith.constant 0 : index
    %c0_49 = arith.constant 0 : index
    %67 = vector.load %arg8[%c0_48, %c0_49] : memref<1x128xf32, #tpu.memory_space<vmem>>, vector<1x128xf32>
    %68 = vector.broadcast %67 : vector<1x128xf32> to vector<2x128xf32>
    %69 = arith.addf %66, %68 : vector<2x128xf32>
    %c0_50 = arith.constant 0 : index
    %c0_51 = arith.constant 0 : index
    %70 = vector.load %arg9[%c0_50, %c0_51] : memref<2x128xf32, #tpu.memory_space<vmem>>, vector<2x128xf32>
    tpu.vector_store %arg9[%c0_50, %c0_51], %69 {strides = array<i32>} : memref<2x128xf32, #tpu.memory_space<vmem>>, vector<2x128xf32>,
    return
  }
}

</mosaic_0001>

<llo_original>
// kernel: rot_green_forward.1
$region0: #{rot_green_forward.1}
  #allocation0 [shape = 'u32[]', space=smem, size = 0x4, offset = 0x4, fixed_abs, tag = 'smem constant byte address 0x4 - core index']
  #allocation1 [shape = 'u32[144,128]{1,0:T(1,128)}', space=vmem, size = 0x12000, scoped, tag = 'internal scratch']
  #allocation2 [shape = 'bf16[1024,256]{1,0:T(8,128)(2,1)}', space=vmem, size = 0x80000, scoped, tag = 'scratch operand']
  #allocation3 [shape = 's32[1]{0}', space=sflag, size = 0x4, scoped, tag = 'scratch operand']
  #allocation11 [shape = 's32[]', space=sflag, size = 0x4, offset = 0, fixed_abs, tag = 'sflag constant byte address 0x0 - dummy sync flag']
  #allocation12 [shape = 's32[]', space=sflag, size = 0x4, offset = 0, fixed_abs, tag = 'sflag constant byte address 0x0 - dummy sync flag']
  #allocation13 [shape = 'u32[]', space=smem, size = 0x4, offset = 0x44, fixed_abs, tag = 'smem constant byte address 0x44 - assertion arg 0']
  #allocation14 [shape = 'u32[]', space=smem, size = 0x4, offset = 0x48, fixed_abs, tag = 'smem constant byte address 0x48 - assertion arg 1']
  %s0 = inlined_call_operand.vmem [shape: f32[2,32,16], index: 0, kind: input, shape index: {}]
  %s1 = inlined_call_operand.hbm [shape: bf16[32,1024], index: 1, kind: input, shape index: {}]
  %s2 = inlined_call_operand.vmem [shape: f32[1,1024], index: 2, kind: input, shape index: {}]
  %s3 = inlined_call_operand.hbm [shape: bf16[1024,256], index: 3, kind: input, shape index: {}]
  %s4 = inlined_call_operand.vmem [shape: f32[1,256], index: 4, kind: input, shape index: {}]
  %s5 = inlined_call_operand.hbm [shape: bf16[256,256], index: 5, kind: input, shape index: {}]
  %s6 = inlined_call_operand.vmem [shape: f32[1,256], index: 6, kind: input, shape index: {}]
  %s7 = inlined_call_operand.hbm [shape: bf16[256,128], index: 7, kind: input, shape index: {}]
  %s8 = inlined_call_operand.vmem [shape: f32[1,128], index: 8, kind: input, shape index: {}]
  %s9 = inlined_call_operand.hbm [shape: f32[2,128], index: 9, kind: output, shape index: {}]
  %s10 = sld [smem:[#allocation0]]
  $region58: #{rot_green_forward.1} parent=0
    _
  %s12 = ssub.s32 1, %s10
  %s13 = scalar_select 0, %s12, %s10
  $region1: #{rot_green_forward.1} parent=0
    #allocation4 [shape = 'u8[65536]{0}', space=vmem, size = 0x10000, scoped, tag = 'input window, operand 1, single buffered']
    #allocation5 [shape = 's32[1]{0}', space=sflag, size = 0x4, scoped, tag = 'scoped memory for rot_green_forward.1']
    #allocation6 [shape = 's32[1]{0}', space=sflag, size = 0x4, scoped, tag = 'scoped memory for rot_green_forward.1']
    #allocation7 [shape = 'u8[131072]{0}', space=vmem, size = 0x20000, scoped, tag = 'input window, operand 5, single buffered']
    #allocation8 [shape = 's32[1]{0}', space=sflag, size = 0x4, scoped, tag = 'scoped memory for rot_green_forward.1']
    #allocation9 [shape = 'u8[65536]{0}', space=vmem, size = 0x10000, scoped, tag = 'input window, operand 7, single buffered']
    #allocation10 [shape = 'u8[1024]{0}', space=vmem, size = 0x400, scoped, tag = 'output window, operand 0, single buffered']
    %14 = vsyncpa [#allocation5], 0
    %15 = vsyncpa [#allocation8], 0
    %16 = vsyncpa [#allocation6], 0
    // Predicated region
    $region2: #{rot_green_forward.1} parent=1 // pred_check
      _
    $region3: #{rot_green_forward.1} parent=1 // pred_check_branch
      %18 = sbr.rel (0) target = $region5
    $region4: #{rot_green_forward.1} parent=1 // pred_region
      _
    $region5: #{rot_green_forward.1} parent=1 // pred_fallthru
      _
    // Predicated region
    $region6: #{rot_green_forward.1} parent=1 // pred_check
      _
    $region7: #{rot_green_forward.1} parent=1 // pred_check_branch
      %20 = sbr.rel (0) target = $region9
    $region8: #{rot_green_forward.1} parent=1 // pred_region
      %s22 = ssub.s32 2048, 2048
      %23 = vsyncadd [#allocation5], %s22
      %s24 = sshll.u32 [#allocation4], 4
      %s25 = int_to_ptr.vmem [resolvable:$true] %s24
      %30 = dma.hbm_to_vmem [thread:$0]  %s1, 2048, %s25, [#allocation5], 512, 512, 32
    $region9: #{rot_green_forward.1} parent=1 // pred_fallthru
      _
    // Predicated region
    $region10: #{rot_green_forward.1} parent=1 // pred_check
      _
    $region11: #{rot_green_forward.1} parent=1 // pred_check_branch
      %32 = sbr.rel (0) target = $region13
    $region12: #{rot_green_forward.1} parent=1 // pred_region
      _
    $region13: #{rot_green_forward.1} parent=1 // pred_fallthru
      _
    // Predicated region
    $region14: #{rot_green_forward.1} parent=1 // pred_check
      _
    $region15: #{rot_green_forward.1} parent=1 // pred_check_branch
      %34 = sbr.rel (0) target = $region17
    $region16: #{rot_green_forward.1} parent=1 // pred_region
      _
    $region17: #{rot_green_forward.1} parent=1 // pred_fallthru
      _
    // Predicated region
    $region18: #{rot_green_forward.1} parent=1 // pred_check
      _
    $region19: #{rot_green_forward.1} parent=1 // pred_check_branch
      %36 = sbr.rel (0) target = $region21
    $region20: #{rot_green_forward.1} parent=1 // pred_region
      %s38 = ssub.s32 4096, 4096
      %39 = vsyncadd [#allocation8], %s38
      %s40 = sshll.u32 [#allocation7], 4
      %s41 = int_to_ptr.vmem [resolvable:$true] %s40
      %46 = dma.hbm_to_vmem [thread:$0]  %s5, 4096, %s41, [#allocation8], 128, 128, 8
    $region21: #{rot_green_forward.1} parent=1 // pred_fallthru
      _
    // Predicated region
    $region22: #{rot_green_forward.1} parent=1 // pred_check
      _
    $region23: #{rot_green_forward.1} parent=1 // pred_check_branch
      %48 = sbr.rel (0) target = $region25
    $region24: #{rot_green_forward.1} parent=1 // pred_region
      _
    $region25: #{rot_green_forward.1} parent=1 // pred_fallthru
      _
    // Predicated region
    $region26: #{rot_green_forward.1} parent=1 // pred_check
      _
    $region27: #{rot_green_forward.1} parent=1 // pred_check_branch
      %50 = sbr.rel (0) target = $region29
    $region28: #{rot_green_forward.1} parent=1 // pred_region
      %s52 = ssub.s32 2048, 2048
      %53 = vsyncadd [#allocation8], %s52
      %s54 = sshll.u32 [#allocation9], 4
      %s55 = int_to_ptr.vmem [resolvable:$true] %s54
      %60 = dma.hbm_to_vmem [thread:$0]  %s7, 2048, %s55, [#allocation8], 64, 64, 4
    $region29: #{rot_green_forward.1} parent=1 // pred_fallthru
      _
    // Predicated region
    $region30: #{rot_green_forward.1} parent=1 // pred_check
      _
    $region31: #{rot_green_forward.1} parent=1 // pred_check_branch
      %62 = sbr.rel (0) target = $region33
    $region32: #{rot_green_forward.1} parent=1 // pred_region
      _
    $region33: #{rot_green_forward.1} parent=1 // pred_fallthru
      _
    // Predicated region
    $region34: #{rot_green_forward.1} parent=1 // pred_check
      _
    $region35: #{rot_green_forward.1} parent=1 // pred_check_branch
      %64 = sbr.rel (0) target = $region37
    $region36: #{rot_green_forward.1} parent=1 // pred_region
      %65 = dma.done [#allocation5], 2048
    $region37: #{rot_green_forward.1} parent=1 // pred_fallthru
      _
    // Predicated region
    $region38: #{rot_green_forward.1} parent=1 // pred_check
      _
    $region39: #{rot_green_forward.1} parent=1 // pred_check_branch
      %67 = sbr.rel (0) target = $region41
    $region40: #{rot_green_forward.1} parent=1 // pred_region
      %68 = dma.done [#allocation8], 4096
    $region41: #{rot_green_forward.1} parent=1 // pred_fallthru
      _
    // Predicated region
    $region42: #{rot_green_forward.1} parent=1 // pred_check
      _
    $region43: #{rot_green_forward.1} parent=1 // pred_check_branch
      %70 = sbr.rel (0) target = $region45
    $region44: #{rot_green_forward.1} parent=1 // pred_region
      %71 = dma.done [#allocation8], 2048
    $region45: #{rot_green_forward.1} parent=1 // pred_fallthru
      _
    // Predicated region
    $region46: #{rot_green_forward.1} parent=1 // pred_check
      _
    $region47: #{rot_green_forward.1} parent=1 // pred_check_branch
      %74 = sbr.rel target = $region49
    $region48: #{rot_green_forward.1} parent=1 // pred_region
      %75 = sst [smem:[#allocation13]] [#allocation12]
      %76 = sst [smem:[#allocation14]] [#allocation11]
    $region49: #{rot_green_forward.1} parent=1 // pred_fallthru
      _
    %78 = shalt.err (0)
    %s80 = sshll.u32 [#allocation2], 4
    %s81 = int_to_ptr.vmem [resolvable:$true] %s80
    %83 = dma.hbm_to_vmem [thread:$0]  %s3, 16384, %s81, [#allocation3]
    %v84 = vld [vmem:[%s0] sm:$0xff]
    %v85 = vld [vmem:[%s0 + $0x8] sm:$0xff]
    %v86 = vld [vmem:[%s0 + $0x10] sm:$0xff]
    %v87 = vld [vmem:[%s0 + $0x18] sm:$0xff]
    %v88 = vld [vmem:[%s0 + $0x20] sm:$0xff]
    %v89 = vld [vmem:[%s0 + $0x28] sm:$0xff]
    %v90 = vld [vmem:[%s0 + $0x30] sm:$0xff]
    %v91 = vld [vmem:[%s0 + $0x38] sm:$0xff]
    %92 = vxpose.xlu0.b32.start [1/16] %v84, 128
    %93 = vxpose.xlu0.b32.cont [2/16] %v85, 128
    %94 = vxpose.xlu0.b32.cont [3/16] %v86, 128
    %95 = vxpose.xlu0.b32.cont [4/16] %v87, 128
    %96 = vxpose.xlu0.b32.cont [5/16] 0.0, 128
    %97 = vxpose.xlu0.b32.cont [6/16] 0.0, 128
    %98 = vxpose.xlu0.b32.cont [7/16] 0.0, 128
    %99 = vxpose.xlu0.b32.cont [8/16] 0.0, 128
    %100 = vxpose.xlu0.b32.cont [9/16] 0.0, 128
    %101 = vxpose.xlu0.b32.cont [10/16] 0.0, 128
    %102 = vxpose.xlu0.b32.cont [11/16] 0.0, 128
    %103 = vxpose.xlu0.b32.cont [12/16] 0.0, 128
    %104 = vxpose.xlu0.b32.cont [13/16] 0.0, 128
    %105 = vxpose.xlu0.b32.cont [14/16] 0.0, 128
    %106 = vxpose.xlu0.b32.cont [15/16] 0.0, 128
    %107 = vxpose.xlu0.b32.end [16/16] 0.0, 128
    %v108 = vpop.trf.xlu0
    %v109 = vpop.trf.xlu0
    %v110 = vpop.trf.xlu0
    %v111 = vpop.trf.xlu0
    %v112 = vpop.trf.xlu0
    %v113 = vpop.trf.xlu0
    %v114 = vpop.trf.xlu0
    %v115 = vpop.trf.xlu0
    %v116 = vpop.trf.xlu0
    %v117 = vpop.trf.xlu0
    %v118 = vpop.trf.xlu0
    %v119 = vpop.trf.xlu0
    %v120 = vpop.trf.xlu0
    %v121 = vpop.trf.xlu0
    %v122 = vpop.trf.xlu0
    %v123 = vpop.trf.xlu0
    %124 = vxpose.xlu0.b32.start [1/16] %v88, 128
    %125 = vxpose.xlu0.b32.cont [2/16] %v89, 128
    %126 = vxpose.xlu0.b32.cont [3/16] %v90, 128
    %127 = vxpose.xlu0.b32.cont [4/16] %v91, 128
    %128 = vxpose.xlu0.b32.cont [5/16] 0.0, 128
    %129 = vxpose.xlu0.b32.cont [6/16] 0.0, 128
    %130 = vxpose.xlu0.b32.cont [7/16] 0.0, 128
    %131 = vxpose.xlu0.b32.cont [8/16] 0.0, 128
    %132 = vxpose.xlu0.b32.cont [9/16] 0.0, 128
    %133 = vxpose.xlu0.b32.cont [10/16] 0.0, 128
    %134 = vxpose.xlu0.b32.cont [11/16] 0.0, 128
    %135 = vxpose.xlu0.b32.cont [12/16] 0.0, 128
    %136 = vxpose.xlu0.b32.cont [13/16] 0.0, 128
    %137 = vxpose.xlu0.b32.cont [14/16] 0.0, 128
    %138 = vxpose.xlu0.b32.cont [15/16] 0.0, 128
    %139 = vxpose.xlu0.b32.end [16/16] 0.0, 128
    %v140 = vpop.trf.xlu0
    %v141 = vpop.trf.xlu0
    %v142 = vpop.trf.xlu0
    %v143 = vpop.trf.xlu0
    %v144 = vpop.trf.xlu0
    %v145 = vpop.trf.xlu0
    %v146 = vpop.trf.xlu0
    %v147 = vpop.trf.xlu0
    %v148 = vpop.trf.xlu0
    %v149 = vpop.trf.xlu0
    %v150 = vpop.trf.xlu0
    %v151 = vpop.trf.xlu0
    %v152 = vpop.trf.xlu0
    %v153 = vpop.trf.xlu0
    %v154 = vpop.trf.xlu0
    %v155 = vpop.trf.xlu0
    %v156 = vpack.c.bf16 %v109, %v108
    %v157 = vpack.c.bf16 %v141, %v140
    %v158 = vld [vmem:[#allocation4] sm:$0xff]
    %v159 = vld [vmem:[#allocation4 + $0x20] sm:$0xff]
    %v160 = vld [vmem:[#allocation4 + $0x40] sm:$0xff]
    %v161 = vld [vmem:[#allocation4 + $0x60] sm:$0xff]
    %v162 = vld [vmem:[%s2] sm:$0x3]
    %v164 = vlaneseq
    %v165 = vshrl.u32 %v164, 7
    %v166 = vsub.s32 0, %v165
    %v167 = vrot.slane %v162, %v166
    %v168 = vlaneseq
    %v169 = vshrl.u32 %v168, 7
    %v170 = vsub.s32 1, %v169
    %v171 = vrot.slane %v162, %v170
    %v178 = vunpack.c.l.b16 %v158
    %v179 = vunpack.c.h.b16 %v158
    %v180 = vunpack.c.l.b16 %v159
    %v181 = vunpack.c.h.b16 %v159
    %v182 = vunpack.c.l.b16 %v160
    %v183 = vunpack.c.h.b16 %v160
    %v184 = vunpack.c.l.b16 %v161
    %v185 = vunpack.c.h.b16 %v161
    %v186 = vpack.c.b16 %v180, %v178
    %v187 = vpack.c.b16 %v181, %v179
    %v188 = vpack.c.b16 %v184, %v182
    %v189 = vpack.c.b16 %v185, %v183
    %vm194 = vcmask 261120
    %v196 = vsel %vm194, %v156, 0
    %v199 = vsel %vm194, %v157, 0
    %201 = vmatprep.subr.bf16.mxu0 0
    %202 = vmatpush1.bf16.msra.mxu0 0
    %203 = vmatprep.subr.bf16.mxu0 0
    %204 = vmatpush1.bf16.msra.mxu0 0
    %205 = vmatprep.subr.bf16.mxu0 0
    %206 = vmatpush1.bf16.msra.mxu0 0
    %207 = vmatprep.subr.bf16.mxu0 0
    %208 = vmatpush1.bf16.msra.mxu0 0
    %209 = vmatprep.subr.bf16.mxu0 0
    %210 = vmatpush1.bf16.msra.mxu0 0
    %211 = vmatprep.subr.bf16.mxu0 0
    %212 = vmatpush1.bf16.msra.mxu0 0
    %213 = vmatprep.subr.bf16.mxu0 %v189
    %214 = vmatpush1.bf16.msra.mxu0 %v188
    %215 = vmatprep.subr.bf16.mxu0 %v187
    %216 = vmatpush1.bf16.msra.mxu0 %v186
    %217 = vmatprep.subr.bf16.mxu0 0
    %218 = vmatpush2.bf16.msra.mxu0 0
    %219 = vmatprep.subr.bf16.mxu0 0
    %220 = vmatpush2.bf16.msra.mxu0 0
    %221 = vmatprep.subr.bf16.mxu0 0
    %222 = vmatpush2.bf16.msra.mxu0 0
    %223 = vmatprep.subr.bf16.mxu0 0
    %224 = vmatpush2.bf16.msra.mxu0 0
    %225 = vmatprep.subr.bf16.mxu0 0
    %226 = vmatpush2.bf16.msra.mxu0 0
    %227 = vmatprep.subr.bf16.mxu0 0
    %228 = vmatpush2.bf16.msra.mxu0 0
    %229 = vmatprep.subr.bf16.mxu0 0
    %230 = vmatpush2.bf16.msra.mxu0 0
    %231 = vmatprep.subr.bf16.mxu0 0
    %232 = vmatpush2.bf16.msra.mxu0 0
    %233 = vmatprep.mubr.bf16.mxu0 0
    %234 = vmatmul.mubr.bf16.gmra.mxu0 %v196
    %v235 = vpop.f32.mrf.mxu0
    %v236 = vadd.f32 %v167, %v235
    %v237 = vpop.f32.mrf.mxu0
    %v238 = vadd.f32 %v171, %v237
    %v239 = vpop.f32.mrf.mxu0
    %v240 = vadd.f32 %v167, %v239
    %v241 = vpop.f32.mrf.mxu0
    %v242 = vadd.f32 %v171, %v241
    %243 = vmatprep.mubr.bf16.mxu0 0
    %244 = vmatmul.mubr.bf16.gmra.mxu0 %v199
    %v245 = vpop.f32.mrf.mxu0
    %v246 = vadd.f32 %v167, %v245
    %v247 = vpop.f32.mrf.mxu0
    %v248 = vadd.f32 %v171, %v247
    %v249 = vpop.f32.mrf.mxu0
    %v250 = vadd.f32 %v167, %v249
    %v251 = vpop.f32.mrf.mxu0
    %v252 = vadd.f32 %v171, %v251
    %253 = vdwg.mxu0
    %v254 = vmax.f32 %v236, 0.0
    %v255 = vmax.f32 %v238, 0.0
    %v256 = vmax.f32 %v240, 0.0
    %v257 = vmax.f32 %v242, 0.0
    %v258 = vmax.f32 %v246, 0.0
    %v259 = vmax.f32 %v248, 0.0
    %v260 = vmax.f32 %v250, 0.0
    %v261 = vmax.f32 %v252, 0.0
    %v262 = vpack.c.bf16 %v256, %v254
    %v263 = vpack.c.bf16 %v257, %v255
    %v264 = vpack.c.bf16 %v260, %v258
    %v265 = vpack.c.bf16 %v261, %v259
    %s266 = smul.u32 4, 128
    %s267 = smul.u32 %s266, 2
    %s268 = sshll.u32 %s267, 4
    %269 = dma.done [#allocation3], %s268
    %v270 = vld [vmem:[#allocation2] sm:$0xff]
    %v271 = vld [vmem:[#allocation2 + $0x8] sm:$0xff]
    %v272 = vld [vmem:[#allocation2 + $0x10] sm:$0xff]
    %v273 = vld [vmem:[#allocation2 + $0x18] sm:$0xff]
    %v274 = vld [vmem:[#allocation2 + $0x20] sm:$0xff]
    %v275 = vld [vmem:[#allocation2 + $0x28] sm:$0xff]
    %v276 = vld [vmem:[#allocation2 + $0x30] sm:$0xff]
    %v277 = vld [vmem:[#allocation2 + $0x38] sm:$0xff]
    %v278 = vld [vmem:[#allocation2 + $0x40] sm:$0xff]
    %v279 = vld [vmem:[#allocation2 + $0x48] sm:$0xff]
    %v280 = vld [vmem:[#allocation2 + $0x50] sm:$0xff]
    %v281 = vld [vmem:[#allocation2 + $0x58] sm:$0xff]
    %v282 = vld [vmem:[#allocation2 + $0x60] sm:$0xff]
    %v283 = vld [vmem:[#allocation2 + $0x68] sm:$0xff]
    %v284 = vld [vmem:[#allocation2 + $0x70] sm:$0xff]
    %v285 = vld [vmem:[#allocation2 + $0x78] sm:$0xff]
    %v286 = vld [vmem:[#allocation2 + $0x80] sm:$0xff]
    %v287 = vld [vmem:[#allocation2 + $0x88] sm:$0xff]
    %v288 = vld [vmem:[#allocation2 + $0x90] sm:$0xff]
    %v289 = vld [vmem:[#allocation2 + $0x98] sm:$0xff]
    %v290 = vld [vmem:[#allocation2 + $0xa0] sm:$0xff]
    %v291 = vld [vmem:[#allocation2 + $0xa8] sm:$0xff]
    %v292 = vld [vmem:[#allocation2 + $0xb0] sm:$0xff]
    %v293 = vld [vmem:[#allocation2 + $0xb8] sm:$0xff]
    %v294 = vld [vmem:[#allocation2 + $0xc0] sm:$0xff]
    %v295 = vld [vmem:[#allocation2 + $0xc8] sm:$0xff]
    %v296 = vld [vmem:[#allocation2 + $0xd0] sm:$0xff]
    %v297 = vld [vmem:[#allocation2 + $0xd8] sm:$0xff]
    %v298 = vld [vmem:[#allocation2 + $0xe0] sm:$0xff]
    %v299 = vld [vmem:[#allocation2 + $0xe8] sm:$0xff]
    %v300 = vld [vmem:[#allocation2 + $0xf0] sm:$0xff]
    %v301 = vld [vmem:[#allocation2 + $0xf8] sm:$0xff]
    %v302 = vld [vmem:[#allocation4 + $0x8] sm:$0xff]
    %v303 = vld [vmem:[#allocation4 + $0x28] sm:$0xff]
    %v304 = vld [vmem:[#allocation4 + $0x48] sm:$0xff]
    %v305 = vld [vmem:[#allocation4 + $0x68] sm:$0xff]
    %v306 = vld [vmem:[%s2 + $0x2] sm:$0x3]
    %v308 = vlaneseq
    %v309 = vshrl.u32 %v308, 7
    %v310 = vsub.s32 0, %v309
    %v311 = vrot.slane %v306, %v310
    %v312 = vlaneseq
    %v313 = vshrl.u32 %v312, 7
    %v314 = vsub.s32 1, %v313
    %v315 = vrot.slane %v306, %v314
    %v322 = vunpack.c.l.b16 %v302
    %v323 = vunpack.c.h.b16 %v302
    %v324 = vunpack.c.l.b16 %v303
    %v325 = vunpack.c.h.b16 %v303
    %v326 = vunpack.c.l.b16 %v304
    %v327 = vunpack.c.h.b16 %v304
    %v328 = vunpack.c.l.b16 %v305
    %v329 = vunpack.c.h.b16 %v305
    %v330 = vpack.c.b16 %v324, %v322
    %v331 = vpack.c.b16 %v325, %v323
    %v332 = vpack.c.b16 %v328, %v326
    %v333 = vpack.c.b16 %v329, %v327
    %338 = vmatprep.subr.bf16.mxu0 0
    %339 = vmatpush1.bf16.msra.mxu0 0
    %340 = vmatprep.subr.bf16.mxu0 0
    %341 = vmatpush1.bf16.msra.mxu0 0
    %342 = vmatprep.subr.bf16.mxu0 0
    %343 = vmatpush1.bf16.msra.mxu0 0
    %344 = vmatprep.subr.bf16.mxu0 0
    %345 = vmatpush1.bf16.msra.mxu0 0
    %346 = vmatprep.subr.bf16.mxu0 0
    %347 = vmatpush1.bf16.msra.mxu0 0
    %348 = vmatprep.subr.bf16.mxu0 0
    %349 = vmatpush1.bf16.msra.mxu0 0
    %350 = vmatprep.subr.bf16.mxu0 %v333
    %351 = vmatpush1.bf16.msra.mxu0 %v332
    %352 = vmatprep.subr.bf16.mxu0 %v331
    %353 = vmatpush1.bf16.msra.mxu0 %v330
    %354 = vmatprep.subr.bf16.mxu0 0
    %355 = vmatpush2.bf16.msra.mxu0 0
    %356 = vmatprep.subr.bf16.mxu0 0
    %357 = vmatpush2.bf16.msra.mxu0 0
    %358 = vmatprep.subr.bf16.mxu0 0
    %359 = vmatpush2.bf16.msra.mxu0 0
    %360 = vmatprep.subr.bf16.mxu0 0
    %361 = vmatpush2.bf16.msra.mxu0 0
    %362 = vmatprep.subr.bf16.mxu0 0
    %363 = vmatpush2.bf16.msra.mxu0 0
    %364 = vmatprep.subr.bf16.mxu0 0
    %365 = vmatpush2.bf16.msra.mxu0 0
    %366 = vmatprep.subr.bf16.mxu0 0
    %367 = vmatpush2.bf16.msra.mxu0 0
    %368 = vmatprep.subr.bf16.mxu0 0
    %369 = vmatpush2.bf16.msra.mxu0 0
    %370 = vmatprep.mubr.bf16.mxu0 0
    %371 = vmatmul.mubr.bf16.gmra.mxu0 %v196
    %v372 = vpop.f32.mrf.mxu0
    %v373 = vadd.f32 %v311, %v372
    %v374 = vpop.f32.mrf.mxu0
    %v375 = vadd.f32 %v315, %v374
    %v376 = vpop.f32.mrf.mxu0
    %v377 = vadd.f32 %v311, %v376
    %v378 = vpop.f32.mrf.mxu0
    %v379 = vadd.f32 %v315, %v378
    %380 = vmatprep.mubr.bf16.mxu0 0
    %381 = vmatmul.mubr.bf16.gmra.mxu0 %v199
    %v382 = vpop.f32.mrf.mxu0
    %v383 = vadd.f32 %v311, %v382
    %v384 = vpop.f32.mrf.mxu0
    %v385 = vadd.f32 %v315, %v384
    %v386 = vpop.f32.mrf.mxu0
    %v387 = vadd.f32 %v311, %v386
    %v388 = vpop.f32.mrf.mxu0
    %v389 = vadd.f32 %v315, %v388
    %390 = vdwg.mxu0
    %v391 = vmax.f32 %v373, 0.0
    %v392 = vmax.f32 %v375, 0.0
    %v393 = vmax.f32 %v377, 0.0
    %v394 = vmax.f32 %v379, 0.0
    %v395 = vmax.f32 %v383, 0.0
    %v396 = vmax.f32 %v385, 0.0
    %v397 = vmax.f32 %v387, 0.0
    %v398 = vmax.f32 %v389, 0.0
    %v399 = vpack.c.bf16 %v393, %v391
    %v400 = vpack.c.bf16 %v394, %v392
    %v401 = vpack.c.bf16 %v397, %v395
    %v402 = vpack.c.bf16 %v398, %v396
    %v403 = vld [vmem:[#allocation2 + $0x100] sm:$0xff]
    %v404 = vld [vmem:[#allocation2 + $0x108] sm:$0xff]
    %v405 = vld [vmem:[#allocation2 + $0x110] sm:$0xff]
    %v406 = vld [vmem:[#allocation2 + $0x118] sm:$0xff]
    %v407 = vld [vmem:[#allocation2 + $0x120] sm:$0xff]
    %v408 = vld [vmem:[#allocation2 + $0x128] sm:$0xff]
    %v409 = vld [vmem:[#allocation2 + $0x130] sm:$0xff]
    %v410 = vld [vmem:[#allocation2 + $0x138] sm:$0xff]
    %v411 = vld [vmem:[#allocation2 + $0x140] sm:$0xff]
    %v412 = vld [vmem:[#allocation2 + $0x148] sm:$0xff]
    %v413 = vld [vmem:[#allocation2 + $0x150] sm:$0xff]
    %v414 = vld [vmem:[#allocation2 + $0x158] sm:$0xff]
    %v415 = vld [vmem:[#allocation2 + $0x160] sm:$0xff]
    %v416 = vld [vmem:[#allocation2 + $0x168] sm:$0xff]
    %v417 = vld [vmem:[#allocation2 + $0x170] sm:$0xff]
    %v418 = vld [vmem:[#allocation2 + $0x178] sm:$0xff]
    %v419 = vld [vmem:[#allocation2 + $0x180] sm:$0xff]
    %v420 = vld [vmem:[#allocation2 + $0x188] sm:$0xff]
    %v421 = vld [vmem:[#allocation2 + $0x190] sm:$0xff]
    %v422 = vld [vmem:[#allocation2 + $0x198] sm:$0xff]
    %v423 = vld [vmem:[#allocation2 + $0x1a0] sm:$0xff]
    %v424 = vld [vmem:[#allocation2 + $0x1a8] sm:$0xff]
    %v425 = vld [vmem:[#allocation2 + $0x1b0] sm:$0xff]
    %v426 = vld [vmem:[#allocation2 + $0x1b8] sm:$0xff]
    %v427 = vld [vmem:[#allocation2 + $0x1c0] sm:$0xff]
    %v428 = vld [vmem:[#allocation2 + $0x1c8] sm:$0xff]
    %v429 = vld [vmem:[#allocation2 + $0x1d0] sm:$0xff]
    %v430 = vld [vmem:[#allocation2 + $0x1d8] sm:$0xff]
    %v431 = vld [vmem:[#allocation2 + $0x1e0] sm:$0xff]
    %v432 = vld [vmem:[#allocation2 + $0x1e8] sm:$0xff]
    %v433 = vld [vmem:[#allocation2 + $0x1f0] sm:$0xff]
    %v434 = vld [vmem:[#allocation2 + $0x1f8] sm:$0xff]
    %v467 = vunpack.c.l.b16 %v403
    %v468 = vunpack.c.h.b16 %v403
    %v469 = vunpack.c.l.b16 %v404
    %v470 = vunpack.c.h.b16 %v404
    %v471 = vunpack.c.l.b16 %v405
    %v472 = vunpack.c.h.b16 %v405
    %v473 = vunpack.c.l.b16 %v406
    %v474 = vunpack.c.h.b16 %v406
    %v475 = vunpack.c.l.b16 %v407
    %v476 = vunpack.c.h.b16 %v407
    %v477 = vunpack.c.l.b16 %v408
    %v478 = vunpack.c.h.b16 %v408
    %v479 = vunpack.c.l.b16 %v409
    %v480 = vunpack.c.h.b16 %v409
    %v481 = vunpack.c.l.b16 %v410
    %v482 = vunpack.c.h.b16 %v410
    %v483 = vunpack.c.l.b16 %v411
    %v484 = vunpack.c.h.b16 %v411
    %v485 = vunpack.c.l.b16 %v412
    %v486 = vunpack.c.h.b16 %v412
    %v487 = vunpack.c.l.b16 %v413
    %v488 = vunpack.c.h.b16 %v413
    %v489 = vunpack.c.l.b16 %v414
    %v490 = vunpack.c.h.b16 %v414
    %v491 = vunpack.c.l.b16 %v415
    %v492 = vunpack.c.h.b16 %v415
    %v493 = vunpack.c.l.b16 %v416
    %v494 = vunpack.c.h.b16 %v416
    %v495 = vunpack.c.l.b16 %v417
    %v496 = vunpack.c.h.b16 %v417
    %v497 = vunpack.c.l.b16 %v418
    %v498 = vunpack.c.h.b16 %v418
    %v499 = vunpack.c.l.b16 %v419
    %v500 = vunpack.c.h.b16 %v419
    %v501 = vunpack.c.l.b16 %v420
    %v502 = vunpack.c.h.b16 %v420
    %v503 = vunpack.c.l.b16 %v421
    %v504 = vunpack.c.h.b16 %v421
    %v505 = vunpack.c.l.b16 %v422
    %v506 = vunpack.c.h.b16 %v422
    %v507 = vunpack.c.l.b16 %v423
    %v508 = vunpack.c.h.b16 %v423
    %v509 = vunpack.c.l.b16 %v424
    %v510 = vunpack.c.h.b16 %v424
    %v511 = vunpack.c.l.b16 %v425
    %v512 = vunpack.c.h.b16 %v425
    %v513 = vunpack.c.l.b16 %v426
    %v514 = vunpack.c.h.b16 %v426
    %v515 = vunpack.c.l.b16 %v427
    %v516 = vunpack.c.h.b16 %v427
    %v517 = vunpack.c.l.b16 %v428
    %v518 = vunpack.c.h.b16 %v428
    %v519 = vunpack.c.l.b16 %v429
    %v520 = vunpack.c.h.b16 %v429
    %v521 = vunpack.c.l.b16 %v430
    %v522 = vunpack.c.h.b16 %v430
    %v523 = vunpack.c.l.b16 %v431
    %v524 = vunpack.c.h.b16 %v431
    %v525 = vunpack.c.l.b16 %v432
    %v526 = vunpack.c.h.b16 %v432
    %v527 = vunpack.c.l.b16 %v433
    %v528 = vunpack.c.h.b16 %v433
    %v529 = vunpack.c.l.b16 %v434
    %v530 = vunpack.c.h.b16 %v434
    %v531 = vpack.c.b16 %v469, %v467
    %v532 = vpack.c.b16 %v470, %v468
    %v533 = vpack.c.b16 %v473, %v471
    %v534 = vpack.c.b16 %v474, %v472
    %v535 = vpack.c.b16 %v477, %v475
    %v536 = vpack.c.b16 %v478, %v476
    %v537 = vpack.c.b16 %v481, %v479
    %v538 = vpack.c.b16 %v482, %v480
    %v539 = vpack.c.b16 %v485, %v483
    %v540 = vpack.c.b16 %v486, %v484
    %v541 = vpack.c.b16 %v489, %v487
    %v542 = vpack.c.b16 %v490, %v488
    %v543 = vpack.c.b16 %v493, %v491
    %v544 = vpack.c.b16 %v494, %v492
    %v545 = vpack.c.b16 %v497, %v495
    %v546 = vpack.c.b16 %v498, %v496
    %v547 = vpack.c.b16 %v501, %v499
    %v548 = vpack.c.b16 %v502, %v500
    %v549 = vpack.c.b16 %v505, %v503
    %v550 = vpack.c.b16 %v506, %v504
    %v551 = vpack.c.b16 %v509, %v507
    %v552 = vpack.c.b16 %v510, %v508
    %v553 = vpack.c.b16 %v513, %v511
    %v554 = vpack.c.b16 %v514, %v512
    %v555 = vpack.c.b16 %v517, %v515
    %v556 = vpack.c.b16 %v518, %v516
    %v557 = vpack.c.b16 %v521, %v519
    %v558 = vpack.c.b16 %v522, %v520
    %v559 = vpack.c.b16 %v525, %v523
    %v560 = vpack.c.b16 %v526, %v524
    %v561 = vpack.c.b16 %v529, %v527
    %v562 = vpack.c.b16 %v530, %v528
    %595 = vmatprep.subr.bf16.mxu0 %v546
    %596 = vmatpush1.bf16.msra.mxu0 %v545
    %597 = vmatprep.subr.bf16.mxu0 %v544
    %598 = vmatpush1.bf16.msra.mxu0 %v543
    %599 = vmatprep.subr.bf16.mxu0 %v542
    %600 = vmatpush1.bf16.msra.mxu0 %v541
    %601 = vmatprep.subr.bf16.mxu0 %v540
    %602 = vmatpush1.bf16.msra.mxu0 %v539
    %603 = vmatprep.subr.bf16.mxu0 %v538
    %604 = vmatpush1.bf16.msra.mxu0 %v537
    %605 = vmatprep.subr.bf16.mxu0 %v536
    %606 = vmatpush1.bf16.msra.mxu0 %v535
    %607 = vmatprep.subr.bf16.mxu0 %v534
    %608 = vmatpush1.bf16.msra.mxu0 %v533
    %609 = vmatprep.subr.bf16.mxu0 %v532
    %610 = vmatpush1.bf16.msra.mxu0 %v531
    %611 = vmatprep.subr.bf16.mxu0 %v562
    %612 = vmatpush2.bf16.msra.mxu0 %v561
    %613 = vmatprep.subr.bf16.mxu0 %v560
    %614 = vmatpush2.bf16.msra.mxu0 %v559
    %615 = vmatprep.subr.bf16.mxu0 %v558
    %616 = vmatpush2.bf16.msra.mxu0 %v557
    %617 = vmatprep.subr.bf16.mxu0 %v556
    %618 = vmatpush2.bf16.msra.mxu0 %v555
    %619 = vmatprep.subr.bf16.mxu0 %v554
    %620 = vmatpush2.bf16.msra.mxu0 %v553
    %621 = vmatprep.subr.bf16.mxu0 %v552
    %622 = vmatpush2.bf16.msra.mxu0 %v551
    %623 = vmatprep.subr.bf16.mxu0 %v550
    %624 = vmatpush2.bf16.msra.mxu0 %v549
    %625 = vmatprep.subr.bf16.mxu0 %v548
    %626 = vmatpush2.bf16.msra.mxu0 %v547
    %627 = vmatprep.mubr.bf16.mxu0 %v400
    %628 = vmatmul.mubr.bf16.gmra.mxu0 %v399
    %v629 = vpop.f32.mrf.mxu0
    %v630 = vadd.f32 0.0, %v629
    %v631 = vpop.f32.mrf.mxu0
    %v632 = vadd.f32 0.0, %v631
    %v633 = vpop.f32.mrf.mxu0
    %v634 = vadd.f32 0.0, %v633
    %v635 = vpop.f32.mrf.mxu0
    %v636 = vadd.f32 0.0, %v635
    %637 = vmatprep.mubr.bf16.mxu0 %v402
    %638 = vmatmul.mubr.bf16.gmra.mxu0 %v401
    %v639 = vpop.f32.mrf.mxu0
    %v640 = vadd.f32 0.0, %v639
    %v641 = vpop.f32.mrf.mxu0
    %v642 = vadd.f32 0.0, %v641
    %v643 = vpop.f32.mrf.mxu0
    %v644 = vadd.f32 0.0, %v643
    %v645 = vpop.f32.mrf.mxu0
    %v646 = vadd.f32 0.0, %v645
    %647 = vdwg.mxu0
    %v680 = vunpack.c.l.b16 %v270
    %v681 = vunpack.c.h.b16 %v270
    %v682 = vunpack.c.l.b16 %v271
    %v683 = vunpack.c.h.b16 %v271
    %v684 = vunpack.c.l.b16 %v272
    %v685 = vunpack.c.h.b16 %v272
    %v686 = vunpack.c.l.b16 %v273
    %v687 = vunpack.c.h.b16 %v273
    %v688 = vunpack.c.l.b16 %v274
    %v689 = vunpack.c.h.b16 %v274
    %v690 = vunpack.c.l.b16 %v275
    %v691 = vunpack.c.h.b16 %v275
    %v692 = vunpack.c.l.b16 %v276
    %v693 = vunpack.c.h.b16 %v276
    %v694 = vunpack.c.l.b16 %v277
    %v695 = vunpack.c.h.b16 %v277
    %v696 = vunpack.c.l.b16 %v278
    %v697 = vunpack.c.h.b16 %v278
    %v698 = vunpack.c.l.b16 %v279
    %v699 = vunpack.c.h.b16 %v279
    %v700 = vunpack.c.l.b16 %v280
    %v701 = vunpack.c.h.b16 %v280
    %v702 = vunpack.c.l.b16 %v281
    %v703 = vunpack.c.h.b16 %v281
    %v704 = vunpack.c.l.b16 %v282
    %v705 = vunpack.c.h.b16 %v282
    %v706 = vunpack.c.l.b16 %v283
    %v707 = vunpack.c.h.b16 %v283
    %v708 = vunpack.c.l.b16 %v284
    %v709 = vunpack.c.h.b16 %v284
    %v710 = vunpack.c.l.b16 %v285
    %v711 = vunpack.c.h.b16 %v285
    %v712 = vunpack.c.l.b16 %v286
    %v713 = vunpack.c.h.b16 %v286
    %v714 = vunpack.c.l.b16 %v287
    %v715 = vunpack.c.h.b16 %v287
    %v716 = vunpack.c.l.b16 %v288
    %v717 = vunpack.c.h.b16 %v288
    %v718 = vunpack.c.l.b16 %v289
    %v719 = vunpack.c.h.b16 %v289
    %v720 = vunpack.c.l.b16 %v290
    %v721 = vunpack.c.h.b16 %v290
    %v722 = vunpack.c.l.b16 %v291
    %v723 = vunpack.c.h.b16 %v291
    %v724 = vunpack.c.l.b16 %v292
    %v725 = vunpack.c.h.b16 %v292
    %v726 = vunpack.c.l.b16 %v293
    %v727 = vunpack.c.h.b16 %v293
    %v728 = vunpack.c.l.b16 %v294
    %v729 = vunpack.c.h.b16 %v294
    %v730 = vunpack.c.l.b16 %v295
    %v731 = vunpack.c.h.b16 %v295
    %v732 = vunpack.c.l.b16 %v296
    %v733 = vunpack.c.h.b16 %v296
    %v734 = vunpack.c.l.b16 %v297
    %v735 = vunpack.c.h.b16 %v297
    %v736 = vunpack.c.l.b16 %v298
    %v737 = vunpack.c.h.b16 %v298
    %v738 = vunpack.c.l.b16 %v299
    %v739 = vunpack.c.h.b16 %v299
    %v740 = vunpack.c.l.b16 %v300
    %v741 = vunpack.c.h.b16 %v300
    %v742 = vunpack.c.l.b16 %v301
    %v743 = vunpack.c.h.b16 %v301
    %v744 = vpack.c.b16 %v682, %v680
    %v745 = vpack.c.b16 %v683, %v681
    %v746 = vpack.c.b16 %v686, %v684
    %v747 = vpack.c.b16 %v687, %v685
    %v748 = vpack.c.b16 %v690, %v688
    %v749 = vpack.c.b16 %v691, %v689
    %v750 = vpack.c.b16 %v694, %v692
    %v751 = vpack.c.b16 %v695, %v693
    %v752 = vpack.c.b16 %v698, %v696
    %v753 = vpack.c.b16 %v699, %v697
    %v754 = vpack.c.b16 %v702, %v700
    %v755 = vpack.c.b16 %v703, %v701
    %v756 = vpack.c.b16 %v706, %v704
    %v757 = vpack.c.b16 %v707, %v705
    %v758 = vpack.c.b16 %v710, %v708
    %v759 = vpack.c.b16 %v711, %v709
    %v760 = vpack.c.b16 %v714, %v712
    %v761 = vpack.c.b16 %v715, %v713
    %v762 = vpack.c.b16 %v718, %v716
    %v763 = vpack.c.b16 %v719, %v717
    %v764 = vpack.c.b16 %v722, %v720
    %v765 = vpack.c.b16 %v723, %v721
    %v766 = vpack.c.b16 %v726, %v724
    %v767 = vpack.c.b16 %v727, %v725
    %v768 = vpack.c.b16 %v730, %v728
    %v769 = vpack.c.b16 %v731, %v729
    %v770 = vpack.c.b16 %v734, %v732
    %v771 = vpack.c.b16 %v735, %v733
    %v772 = vpack.c.b16 %v738, %v736
    %v773 = vpack.c.b16 %v739, %v737
    %v774 = vpack.c.b16 %v742, %v740
    %v775 = vpack.c.b16 %v743, %v741
    %808 = vmatprep.subr.bf16.mxu0 %v759
    %809 = vmatpush1.bf16.msra.mxu0 %v758
    %810 = vmatprep.subr.bf16.mxu0 %v757
    %811 = vmatpush1.bf16.msra.mxu0 %v756
    %812 = vmatprep.subr.bf16.mxu0 %v755
    %813 = vmatpush1.bf16.msra.mxu0 %v754
    %814 = vmatprep.subr.bf16.mxu0 %v753
    %815 = vmatpush1.bf16.msra.mxu0 %v752
    %816 = vmatprep.subr.bf16.mxu0 %v751
    %817 = vmatpush1.bf16.msra.mxu0 %v750
    %818 = vmatprep.subr.bf16.mxu0 %v749
    %819 = vmatpush1.bf16.msra.mxu0 %v748
    %820 = vmatprep.subr.bf16.mxu0 %v747
    %821 = vmatpush1.bf16.msra.mxu0 %v746
    %822 = vmatprep.subr.bf16.mxu0 %v745
    %823 = vmatpush1.bf16.msra.mxu0 %v744
    %824 = vmatprep.subr.bf16.mxu0 %v775
    %825 = vmatpush2.bf16.msra.mxu0 %v774
    %826 = vmatprep.subr.bf16.mxu0 %v773
    %827 = vmatpush2.bf16.msra.mxu0 %v772
    %828 = vmatprep.subr.bf16.mxu0 %v771
    %829 = vmatpush2.bf16.msra.mxu0 %v770
    %830 = vmatprep.subr.bf16.mxu0 %v769
    %831 = vmatpush2.bf16.msra.mxu0 %v768
    %832 = vmatprep.subr.bf16.mxu0 %v767
    %833 = vmatpush2.bf16.msra.mxu0 %v766
    %834 = vmatprep.subr.bf16.mxu0 %v765
    %835 = vmatpush2.bf16.msra.mxu0 %v764
    %836 = vmatprep.subr.bf16.mxu0 %v763
    %837 = vmatpush2.bf16.msra.mxu0 %v762
    %838 = vmatprep.subr.bf16.mxu0 %v761
    %839 = vmatpush2.bf16.msra.mxu0 %v760
    %840 = vmatprep.mubr.bf16.mxu0 %v263
    %841 = vmatmul.mubr.bf16.gmra.mxu0 %v262
    %v842 = vpop.f32.mrf.mxu0
    %v843 = vadd.f32 %v630, %v842
    %v844 = vpop.f32.mrf.mxu0
    %v845 = vadd.f32 %v632, %v844
    %v846 = vpop.f32.mrf.mxu0
    %v847 = vadd.f32 %v634, %v846
    %v848 = vpop.f32.mrf.mxu0
    %v849 = vadd.f32 %v636, %v848
    %850 = vmatprep.mubr.bf16.mxu0 %v265
    %851 = vmatmul.mubr.bf16.gmra.mxu0 %v264
    %v852 = vpop.f32.mrf.mxu0
    %v853 = vadd.f32 %v640, %v852
    %v854 = vpop.f32.mrf.mxu0
    %v855 = vadd.f32 %v642, %v854
    %v856 = vpop.f32.mrf.mxu0
    %v857 = vadd.f32 %v644, %v856
    %v858 = vpop.f32.mrf.mxu0
    %v859 = vadd.f32 %v646, %v858
    %860 = vdwg.mxu0
    %v861 = vld [vmem:[#allocation4 + $0x10] sm:$0xff]
    %v862 = vld [vmem:[#allocation4 + $0x30] sm:$0xff]
    %v863 = vld [vmem:[#allocation4 + $0x50] sm:$0xff]
    %v864 = vld [vmem:[#allocation4 + $0x70] sm:$0xff]
    %v865 = vld [vmem:[%s2 + $0x4] sm:$0x3]
    %v867 = vlaneseq
    %v868 = vshrl.u32 %v867, 7
    %v869 = vsub.s32 0, %v868
    %v870 = vrot.slane %v865, %v869
    %v871 = vlaneseq
    %v872 = vshrl.u32 %v871, 7
    %v873 = vsub.s32 1, %v872
    %v874 = vrot.slane %v865, %v873
    %v881 = vunpack.c.l.b16 %v861
    %v882 = vunpack.c.h.b16 %v861
    %v883 = vunpack.c.l.b16 %v862
    %v884 = vunpack.c.h.b16 %v862
    %v885 = vunpack.c.l.b16 %v863
    %v886 = vunpack.c.h.b16 %v863
    %v887 = vunpack.c.l.b16 %v864
    %v888 = vunpack.c.h.b16 %v864
    %v889 = vpack.c.b16 %v883, %v881
    %v890 = vpack.c.b16 %v884, %v882
    %v891 = vpack.c.b16 %v887, %v885
    %v892 = vpack.c.b16 %v888, %v886
    %897 = vmatprep.subr.bf16.mxu0 0
    %898 = vmatpush1.bf16.msra.mxu0 0
    %899 = vmatprep.subr.bf16.mxu0 0
    %900 = vmatpush1.bf16.msra.mxu0 0
    %901 = vmatprep.subr.bf16.mxu0 0
    %902 = vmatpush1.bf16.msra.mxu0 0
    %903 = vmatprep.subr.bf16.mxu0 0
    %904 = vmatpush1.bf16.msra.mxu0 0
    %905 = vmatprep.subr.bf16.mxu0 0
    %906 = vmatpush1.bf16.msra.mxu0 0
    %907 = vmatprep.subr.bf16.mxu0 0
    %908 = vmatpush1.bf16.msra.mxu0 0
    %909 = vmatprep.subr.bf16.mxu0 %v892
    %910 = vmatpush1.bf16.msra.mxu0 %v891
    %911 = vmatprep.subr.bf16.mxu0 %v890
    %912 = vmatpush1.bf16.msra.mxu0 %v889
    %913 = vmatprep.subr.bf16.mxu0 0
    %914 = vmatpush2.bf16.msra.mxu0 0
    %915 = vmatprep.subr.bf16.mxu0 0
    %916 = vmatpush2.bf16.msra.mxu0 0
    %917 = vmatprep.subr.bf16.mxu0 0
    %918 = vmatpush2.bf16.msra.mxu0 0
    %919 = vmatprep.subr.bf16.mxu0 0
    %920 = vmatpush2.bf16.msra.mxu0 0
    %921 = vmatprep.subr.bf16.mxu0 0
    %922 = vmatpush2.bf16.msra.mxu0 0
    %923 = vmatprep.subr.bf16.mxu0 0
    %924 = vmatpush2.bf16.msra.mxu0 0
    %925 = vmatprep.subr.bf16.mxu0 0
    %926 = vmatpush2.bf16.msra.mxu0 0
    %927 = vmatprep.subr.bf16.mxu0 0
    %928 = vmatpush2.bf16.msra.mxu0 0
    %929 = vmatprep.mubr.bf16.mxu0 0
    %930 = vmatmul.mubr.bf16.gmra.mxu0 %v196
    %v931 = vpop.f32.mrf.mxu0
    %v932 = vadd.f32 %v870, %v931
    %v933 = vpop.f32.mrf.mxu0
    %v934 = vadd.f32 %v874, %v933
    %v935 = vpop.f32.mrf.mxu0
    %v936 = vadd.f32 %v870, %v935
    %v937 = vpop.f32.mrf.mxu0
    %v938 = vadd.f32 %v874, %v937
    %939 = vmatprep.mubr.bf16.mxu0 0
    %940 = vmatmul.mubr.bf16.gmra.mxu0 %v199
    %v941 = vpop.f32.mrf.mxu0
    %v942 = vadd.f32 %v870, %v941
    %v943 = vpop.f32.mrf.mxu0
    %v944 = vadd.f32 %v874, %v943
    %v945 = vpop.f32.mrf.mxu0
    %v946 = vadd.f32 %v870, %v945
    %v947 = vpop.f32.mrf.mxu0
    %v948 = vadd.f32 %v874, %v947
    %949 = vdwg.mxu0
    %v950 = vmax.f32 %v932, 0.0
    %v951 = vmax.f32 %v934, 0.0
    %v952 = vmax.f32 %v936, 0.0
    %v953 = vmax.f32 %v938, 0.0
    %v954 = vmax.f32 %v942, 0.0
    %v955 = vmax.f32 %v944, 0.0
    %v956 = vmax.f32 %v946, 0.0
    %v957 = vmax.f32 %v948, 0.0
    %v958 = vpack.c.bf16 %v952, %v950
    %v959 = vpack.c.bf16 %v953, %v951
    %v960 = vpack.c.bf16 %v956, %v954
    %v961 = vpack.c.bf16 %v957, %v955
    %v962 = vld [vmem:[#allocation2 + $0x200] sm:$0xff]
    %v963 = vld [vmem:[#allocation2 + $0x208] sm:$0xff]
    %v964 = vld [vmem:[#allocation2 + $0x210] sm:$0xff]
    %v965 = vld [vmem:[#allocation2 + $0x218] sm:$0xff]
    %v966 = vld [vmem:[#allocation2 + $0x220] sm:$0xff]
    %v967 = vld [vmem:[#allocation2 + $0x228] sm:$0xff]
    %v968 = vld [vmem:[#allocation2 + $0x230] sm:$0xff]
    %v969 = vld [vmem:[#allocation2 + $0x238] sm:$0xff]
    %v970 = vld [vmem:[#allocation2 + $0x240] sm:$0xff]
    %v971 = vld [vmem:[#allocation2 + $0x248] sm:$0xff]
    %v972 = vld [vmem:[#allocation2 + $0x250] sm:$0xff]
    %v973 = vld [vmem:[#allocation2 + $0x258] sm:$0xff]
    %v974 = vld [vmem:[#allocation2 + $0x260] sm:$0xff]
    %v975 = vld [vmem:[#allocation2 + $0x268] sm:$0xff]
    %v976 = vld [vmem:[#allocation2 + $0x270] sm:$0xff]
    %v977 = vld [vmem:[#allocation2 + $0x278] sm:$0xff]
    %v978 = vld [vmem:[#allocation2 + $0x280] sm:$0xff]
    %v979 = vld [vmem:[#allocation2 + $0x288] sm:$0xff]
    %v980 = vld [vmem:[#allocation2 + $0x290] sm:$0xff]
    %v981 = vld [vmem:[#allocation2 + $0x298] sm:$0xff]
    %v982 = vld [vmem:[#allocation2 + $0x2a0] sm:$0xff]
    %v983 = vld [vmem:[#allocation2 + $0x2a8] sm:$0xff]
    %v984 = vld [vmem:[#allocation2 + $0x2b0] sm:$0xff]
    %v985 = vld [vmem:[#allocation2 + $0x2b8] sm:$0xff]
    %v986 = vld [vmem:[#allocation2 + $0x2c0] sm:$0xff]
    %v987 = vld [vmem:[#allocation2 + $0x2c8] sm:$0xff]
    %v988 = vld [vmem:[#allocation2 + $0x2d0] sm:$0xff]
    %v989 = vld [vmem:[#allocation2 + $0x2d8] sm:$0xff]
    %v990 = vld [vmem:[#allocation2 + $0x2e0] sm:$0xff]
    %v991 = vld [vmem:[#allocation2 + $0x2e8] sm:$0xff]
    %v992 = vld [vmem:[#allocation2 + $0x2f0] sm:$0xff]
    %v993 = vld [vmem:[#allocation2 + $0x2f8] sm:$0xff]
    %v1026 = vunpack.c.l.b16 %v962
    %v1027 = vunpack.c.h.b16 %v962
    %v1028 = vunpack.c.l.b16 %v963
    %v1029 = vunpack.c.h.b16 %v963
    %v1030 = vunpack.c.l.b16 %v964
    %v1031 = vunpack.c.h.b16 %v964
    %v1032 = vunpack.c.l.b16 %v965
    %v1033 = vunpack.c.h.b16 %v965
    %v1034 = vunpack.c.l.b16 %v966
    %v1035 = vunpack.c.h.b16 %v966
    %v1036 = vunpack.c.l.b16 %v967
    %v1037 = vunpack.c.h.b16 %v967
    %v1038 = vunpack.c.l.b16 %v968
    %v1039 = vunpack.c.h.b16 %v968
    %v1040 = vunpack.c.l.b16 %v969
    %v1041 = vunpack.c.h.b16 %v969
    %v1042 = vunpack.c.l.b16 %v970
    %v1043 = vunpack.c.h.b16 %v970
    %v1044 = vunpack.c.l.b16 %v971
    %v1045 = vunpack.c.h.b16 %v971
    %v1046 = vunpack.c.l.b16 %v972
    %v1047 = vunpack.c.h.b16 %v972
    %v1048 = vunpack.c.l.b16 %v973
    %v1049 = vunpack.c.h.b16 %v973
    %v1050 = vunpack.c.l.b16 %v974
    %v1051 = vunpack.c.h.b16 %v974
    %v1052 = vunpack.c.l.b16 %v975
    %v1053 = vunpack.c.h.b16 %v975
    %v1054 = vunpack.c.l.b16 %v976
    %v1055 = vunpack.c.h.b16 %v976
    %v1056 = vunpack.c.l.b16 %v977
    %v1057 = vunpack.c.h.b16 %v977
    %v1058 = vunpack.c.l.b16 %v978
    %v1059 = vunpack.c.h.b16 %v978
    %v1060 = vunpack.c.l.b16 %v979
    %v1061 = vunpack.c.h.b16 %v979
    %v1062 = vunpack.c.l.b16 %v980
    %v1063 = vunpack.c.h.b16 %v980
    %v1064 = vunpack.c.l.b16 %v981
    %v1065 = vunpack.c.h.b16 %v981
    %v1066 = vunpack.c.l.b16 %v982
    %v1067 = vunpack.c.h.b16 %v982
    %v1068 = vunpack.c.l.b16 %v983
    %v1069 = vunpack.c.h.b16 %v983
    %v1070 = vunpack.c.l.b16 %v984
    %v1071 = vunpack.c.h.b16 %v984
    %v1072 = vunpack.c.l.b16 %v985
    %v1073 = vunpack.c.h.b16 %v985
    %v1074 = vunpack.c.l.b16 %v986
    %v1075 = vunpack.c.h.b16 %v986
    %v1076 = vunpack.c.l.b16 %v987
    %v1077 = vunpack.c.h.b16 %v987
    %v1078 = vunpack.c.l.b16 %v988
    %v1079 = vunpack.c.h.b16 %v988
    %v1080 = vunpack.c.l.b16 %v989
    %v1081 = vunpack.c.h.b16 %v989
    %v1082 = vunpack.c.l.b16 %v990
    %v1083 = vunpack.c.h.b16 %v990
    %v1084 = vunpack.c.l.b16 %v991
    %v1085 = vunpack.c.h.b16 %v991
    %v1086 = vunpack.c.l.b16 %v992
    %v1087 = vunpack.c.h.b16 %v992
    %v1088 = vunpack.c.l.b16 %v993
    %v1089 = vunpack.c.h.b16 %v993
    %v1090 = vpack.c.b16 %v1028, %v1026
    %v1091 = vpack.c.b16 %v1029, %v1027
    %v1092 = vpack.c.b16 %v1032, %v1030
    %v1093 = vpack.c.b16 %v1033, %v1031
    %v1094 = vpack.c.b16 %v1036, %v1034
    %v1095 = vpack.c.b16 %v1037, %v1035
    %v1096 = vpack.c.b16 %v1040, %v1038
    %v1097 = vpack.c.b16 %v1041, %v1039
    %v1098 = vpack.c.b16 %v1044, %v1042
    %v1099 = vpack.c.b16 %v1045, %v1043
    %v1100 = vpack.c.b16 %v1048, %v1046
    %v1101 = vpack.c.b16 %v1049, %v1047
    %v1102 = vpack.c.b16 %v1052, %v1050
    %v1103 = vpack.c.b16 %v1053, %v1051
    %v1104 = vpack.c.b16 %v1056, %v1054
    %v1105 = vpack.c.b16 %v1057, %v1055
    %v1106 = vpack.c.b16 %v1060, %v1058
    %v1107 = vpack.c.b16 %v1061, %v1059
    %v1108 = vpack.c.b16 %v1064, %v1062
    %v1109 = vpack.c.b16 %v1065, %v1063
    %v1110 = vpack.c.b16 %v1068, %v1066
    %v1111 = vpack.c.b16 %v1069, %v1067
    %v1112 = vpack.c.b16 %v1072, %v1070
    %v1113 = vpack.c.b16 %v1073, %v1071
    %v1114 = vpack.c.b16 %v1076, %v1074
    %v1115 = vpack.c.b16 %v1077, %v1075
    %v1116 = vpack.c.b16 %v1080, %v1078
    %v1117 = vpack.c.b16 %v1081, %v1079
    %v1118 = vpack.c.b16 %v1084, %v1082
    %v1119 = vpack.c.b16 %v1085, %v1083
    %v1120 = vpack.c.b16 %v1088, %v1086
    %v1121 = vpack.c.b16 %v1089, %v1087
    %1154 = vmatprep.subr.bf16.mxu0 %v1105
    %1155 = vmatpush1.bf16.msra.mxu0 %v1104
    %1156 = vmatprep.subr.bf16.mxu0 %v1103
    %1157 = vmatpush1.bf16.msra.mxu0 %v1102
    %1158 = vmatprep.subr.bf16.mxu0 %v1101
    %1159 = vmatpush1.bf16.msra.mxu0 %v1100
    %1160 = vmatprep.subr.bf16.mxu0 %v1099
    %1161 = vmatpush1.bf16.msra.mxu0 %v1098
    %1162 = vmatprep.subr.bf16.mxu0 %v1097
    %1163 = vmatpush1.bf16.msra.mxu0 %v1096
    %1164 = vmatprep.subr.bf16.mxu0 %v1095
    %1165 = vmatpush1.bf16.msra.mxu0 %v1094
    %1166 = vmatprep.subr.bf16.mxu0 %v1093
    %1167 = vmatpush1.bf16.msra.mxu0 %v1092
    %1168 = vmatprep.subr.bf16.mxu0 %v1091
    %1169 = vmatpush1.bf16.msra.mxu0 %v1090
    %1170 = vmatprep.subr.bf16.mxu0 %v1121
    %1171 = vmatpush2.bf16.msra.mxu0 %v1120
    %1172 = vmatprep.subr.bf16.mxu0 %v1119
    %1173 = vmatpush2.bf16.msra.mxu0 %v1118
    %1174 = vmatprep.subr.bf16.mxu0 %v1117
    %1175 = vmatpush2.bf16.msra.mxu0 %v1116
    %1176 = vmatprep.subr.bf16.mxu0 %v1115
    %1177 = vmatpush2.bf16.msra.mxu0 %v1114
    %1178 = vmatprep.subr.bf16.mxu0 %v1113
    %1179 = vmatpush2.bf16.msra.mxu0 %v1112
    %1180 = vmatprep.subr.bf16.mxu0 %v1111
    %1181 = vmatpush2.bf16.msra.mxu0 %v1110
    %1182 = vmatprep.subr.bf16.mxu0 %v1109
    %1183 = vmatpush2.bf16.msra.mxu0 %v1108
    %1184 = vmatprep.subr.bf16.mxu0 %v1107
    %1185 = vmatpush2.bf16.msra.mxu0 %v1106
    %1186 = vmatprep.mubr.bf16.mxu0 %v959
    %1187 = vmatmul.mubr.bf16.gmra.mxu0 %v958
    %v1188 = vpop.f32.mrf.mxu0
    %v1189 = vadd.f32 0.0, %v1188
    %v1190 = vpop.f32.mrf.mxu0
    %v1191 = vadd.f32 0.0, %v1190
    %v1192 = vpop.f32.mrf.mxu0
    %v1193 = vadd.f32 0.0, %v1192
    %v1194 = vpop.f32.mrf.mxu0
    %v1195 = vadd.f32 0.0, %v1194
    %1196 = vmatprep.mubr.bf16.mxu0 %v961
    %1197 = vmatmul.mubr.bf16.gmra.mxu0 %v960
    %v1198 = vpop.f32.mrf.mxu0
    %v1199 = vadd.f32 0.0, %v1198
    %v1200 = vpop.f32.mrf.mxu0
    %v1201 = vadd.f32 0.0, %v1200
    %v1202 = vpop.f32.mrf.mxu0
    %v1203 = vadd.f32 0.0, %v1202
    %v1204 = vpop.f32.mrf.mxu0
    %v1205 = vadd.f32 0.0, %v1204
    %1206 = vdwg.mxu0
    %v1207 = vadd.f32 %v843, %v1189
    %v1208 = vadd.f32 %v845, %v1191
    %v1209 = vadd.f32 %v847, %v1193
    %v1210 = vadd.f32 %v849, %v1195
    %v1211 = vadd.f32 %v853, %v1199
    %v1212 = vadd.f32 %v855, %v1201
    %v1213 = vadd.f32 %v857, %v1203
    %v1214 = vadd.f32 %v859, %v1205
    %v1215 = vld [vmem:[#allocation4 + $0x18] sm:$0xff]
    %v1216 = vld [vmem:[#allocation4 + $0x38] sm:$0xff]
    %v1217 = vld [vmem:[#allocation4 + $0x58] sm:$0xff]
    %v1218 = vld [vmem:[#allocation4 + $0x78] sm:$0xff]
    %v1219 = vld [vmem:[%s2 + $0x6] sm:$0x3]
    %v1221 = vlaneseq
    %v1222 = vshrl.u32 %v1221, 7
    %v1223 = vsub.s32 0, %v1222
    %v1224 = vrot.slane %v1219, %v1223
    %v1225 = vlaneseq
    %v1226 = vshrl.u32 %v1225, 7
    %v1227 = vsub.s32 1, %v1226
    %v1228 = vrot.slane %v1219, %v1227
    %v1235 = vunpack.c.l.b16 %v1215
    %v1236 = vunpack.c.h.b16 %v1215
    %v1237 = vunpack.c.l.b16 %v1216
    %v1238 = vunpack.c.h.b16 %v1216
    %v1239 = vunpack.c.l.b16 %v1217
    %v1240 = vunpack.c.h.b16 %v1217
    %v1241 = vunpack.c.l.b16 %v1218
    %v1242 = vunpack.c.h.b16 %v1218
    %v1243 = vpack.c.b16 %v1237, %v1235
    %v1244 = vpack.c.b16 %v1238, %v1236
    %v1245 = vpack.c.b16 %v1241, %v1239
    %v1246 = vpack.c.b16 %v1242, %v1240
    %1251 = vmatprep.subr.bf16.mxu0 0
    %1252 = vmatpush1.bf16.msra.mxu0 0
    %1253 = vmatprep.subr.bf16.mxu0 0
    %1254 = vmatpush1.bf16.msra.mxu0 0
    %1255 = vmatprep.subr.bf16.mxu0 0
    %1256 = vmatpush1.bf16.msra.mxu0 0
    %1257 = vmatprep.subr.bf16.mxu0 0
    %1258 = vmatpush1.bf16.msra.mxu0 0
    %1259 = vmatprep.subr.bf16.mxu0 0
    %1260 = vmatpush1.bf16.msra.mxu0 0
    %1261 = vmatprep.subr.bf16.mxu0 0
    %1262 = vmatpush1.bf16.msra.mxu0 0
    %1263 = vmatprep.subr.bf16.mxu0 %v1246
    %1264 = vmatpush1.bf16.msra.mxu0 %v1245
    %1265 = vmatprep.subr.bf16.mxu0 %v1244
    %1266 = vmatpush1.bf16.msra.mxu0 %v1243
    %1267 = vmatprep.subr.bf16.mxu0 0
    %1268 = vmatpush2.bf16.msra.mxu0 0
    %1269 = vmatprep.subr.bf16.mxu0 0
    %1270 = vmatpush2.bf16.msra.mxu0 0
    %1271 = vmatprep.subr.bf16.mxu0 0
    %1272 = vmatpush2.bf16.msra.mxu0 0
    %1273 = vmatprep.subr.bf16.mxu0 0
    %1274 = vmatpush2.bf16.msra.mxu0 0
    %1275 = vmatprep.subr.bf16.mxu0 0
    %1276 = vmatpush2.bf16.msra.mxu0 0
    %1277 = vmatprep.subr.bf16.mxu0 0
    %1278 = vmatpush2.bf16.msra.mxu0 0
    %1279 = vmatprep.subr.bf16.mxu0 0
    %1280 = vmatpush2.bf16.msra.mxu0 0
    %1281 = vmatprep.subr.bf16.mxu0 0
    %1282 = vmatpush2.bf16.msra.mxu0 0
    %1283 = vmatprep.mubr.bf16.mxu0 0
    %1284 = vmatmul.mubr.bf16.gmra.mxu0 %v196
    %v1285 = vpop.f32.mrf.mxu0
    %v1286 = vadd.f32 %v1224, %v1285
    %v1287 = vpop.f32.mrf.mxu0
    %v1288 = vadd.f32 %v1228, %v1287
    %v1289 = vpop.f32.mrf.mxu0
    %v1290 = vadd.f32 %v1224, %v1289
    %v1291 = vpop.f32.mrf.mxu0
    %v1292 = vadd.f32 %v1228, %v1291
    %1293 = vmatprep.mubr.bf16.mxu0 0
    %1294 = vmatmul.mubr.bf16.gmra.mxu0 %v199
    %v1295 = vpop.f32.mrf.mxu0
    %v1296 = vadd.f32 %v1224, %v1295
    %v1297 = vpop.f32.mrf.mxu0
    %v1298 = vadd.f32 %v1228, %v1297
    %v1299 = vpop.f32.mrf.mxu0
    %v1300 = vadd.f32 %v1224, %v1299
    %v1301 = vpop.f32.mrf.mxu0
    %v1302 = vadd.f32 %v1228, %v1301
    %1303 = vdwg.mxu0
    %v1304 = vmax.f32 %v1286, 0.0
    %v1305 = vmax.f32 %v1288, 0.0
    %v1306 = vmax.f32 %v1290, 0.0
    %v1307 = vmax.f32 %v1292, 0.0
    %v1308 = vmax.f32 %v1296, 0.0
    %v1309 = vmax.f32 %v1298, 0.0
    %v1310 = vmax.f32 %v1300, 0.0
    %v1311 = vmax.f32 %v1302, 0.0
    %v1312 = vpack.c.bf16 %v1306, %v1304
    %v1313 = vpack.c.bf16 %v1307, %v1305
    %v1314 = vpack.c.bf16 %v1310, %v1308
    %v1315 = vpack.c.bf16 %v1311, %v1309
    %v1316 = vld [vmem:[#allocation2 + $0x300] sm:$0xff]
    %v1317 = vld [vmem:[#allocation2 + $0x308] sm:$0xff]
    %v1318 = vld [vmem:[#allocation2 + $0x310] sm:$0xff]
    %v1319 = vld [vmem:[#allocation2 + $0x318] sm:$0xff]
    %v1320 = vld [vmem:[#allocation2 + $0x320] sm:$0xff]
    %v1321 = vld [vmem:[#allocation2 + $0x328] sm:$0xff]
    %v1322 = vld [vmem:[#allocation2 + $0x330] sm:$0xff]
    %v1323 = vld [vmem:[#allocation2 + $0x338] sm:$0xff]
    %v1324 = vld [vmem:[#allocation2 + $0x340] sm:$0xff]
    %v1325 = vld [vmem:[#allocation2 + $0x348] sm:$0xff]
    %v1326 = vld [vmem:[#allocation2 + $0x350] sm:$0xff]
    %v1327 = vld [vmem:[#allocation2 + $0x358] sm:$0xff]
    %v1328 = vld [vmem:[#allocation2 + $0x360] sm:$0xff]
    %v1329 = vld [vmem:[#allocation2 + $0x368] sm:$0xff]
    %v1330 = vld [vmem:[#allocation2 + $0x370] sm:$0xff]
    %v1331 = vld [vmem:[#allocation2 + $0x378] sm:$0xff]
    %v1332 = vld [vmem:[#allocation2 + $0x380] sm:$0xff]
    %v1333 = vld [vmem:[#allocation2 + $0x388] sm:$0xff]
    %v1334 = vld [vmem:[#allocation2 + $0x390] sm:$0xff]
    %v1335 = vld [vmem:[#allocation2 + $0x398] sm:$0xff]
    %v1336 = vld [vmem:[#allocation2 + $0x3a0] sm:$0xff]
    %v1337 = vld [vmem:[#allocation2 + $0x3a8] sm:$0xff]
    %v1338 = vld [vmem:[#allocation2 + $0x3b0] sm:$0xff]
    %v1339 = vld [vmem:[#allocation2 + $0x3b8] sm:$0xff]
    %v1340 = vld [vmem:[#allocation2 + $0x3c0] sm:$0xff]
    %v1341 = vld [vmem:[#allocation2 + $0x3c8] sm:$0xff]
    %v1342 = vld [vmem:[#allocation2 + $0x3d0] sm:$0xff]
    %v1343 = vld [vmem:[#allocation2 + $0x3d8] sm:$0xff]
    %v1344 = vld [vmem:[#allocation2 + $0x3e0] sm:$0xff]
    %v1345 = vld [vmem:[#allocation2 + $0x3e8] sm:$0xff]
    %v1346 = vld [vmem:[#allocation2 + $0x3f0] sm:$0xff]
    %v1347 = vld [vmem:[#allocation2 + $0x3f8] sm:$0xff]
    %v1380 = vunpack.c.l.b16 %v1316
    %v1381 = vunpack.c.h.b16 %v1316
    %v1382 = vunpack.c.l.b16 %v1317
    %v1383 = vunpack.c.h.b16 %v1317
    %v1384 = vunpack.c.l.b16 %v1318
    %v1385 = vunpack.c.h.b16 %v1318
    %v1386 = vunpack.c.l.b16 %v1319
    %v1387 = vunpack.c.h.b16 %v1319
    %v1388 = vunpack.c.l.b16 %v1320
    %v1389 = vunpack.c.h.b16 %v1320
    %v1390 = vunpack.c.l.b16 %v1321
    %v1391 = vunpack.c.h.b16 %v1321
    %v1392 = vunpack.c.l.b16 %v1322
    %v1393 = vunpack.c.h.b16 %v1322
    %v1394 = vunpack.c.l.b16 %v1323
    %v1395 = vunpack.c.h.b16 %v1323
    %v1396 = vunpack.c.l.b16 %v1324
    %v1397 = vunpack.c.h.b16 %v1324
    %v1398 = vunpack.c.l.b16 %v1325
    %v1399 = vunpack.c.h.b16 %v1325
    %v1400 = vunpack.c.l.b16 %v1326
    %v1401 = vunpack.c.h.b16 %v1326
    %v1402 = vunpack.c.l.b16 %v1327
    %v1403 = vunpack.c.h.b16 %v1327
    %v1404 = vunpack.c.l.b16 %v1328
    %v1405 = vunpack.c.h.b16 %v1328
    %v1406 = vunpack.c.l.b16 %v1329
    %v1407 = vunpack.c.h.b16 %v1329
    %v1408 = vunpack.c.l.b16 %v1330
    %v1409 = vunpack.c.h.b16 %v1330
    %v1410 = vunpack.c.l.b16 %v1331
    %v1411 = vunpack.c.h.b16 %v1331
    %v1412 = vunpack.c.l.b16 %v1332
    %v1413 = vunpack.c.h.b16 %v1332
    %v1414 = vunpack.c.l.b16 %v1333
    %v1415 = vunpack.c.h.b16 %v1333
    %v1416 = vunpack.c.l.b16 %v1334
    %v1417 = vunpack.c.h.b16 %v1334
    %v1418 = vunpack.c.l.b16 %v1335
    %v1419 = vunpack.c.h.b16 %v1335
    %v1420 = vunpack.c.l.b16 %v1336
    %v1421 = vunpack.c.h.b16 %v1336
    %v1422 = vunpack.c.l.b16 %v1337
    %v1423 = vunpack.c.h.b16 %v1337
    %v1424 = vunpack.c.l.b16 %v1338
    %v1425 = vunpack.c.h.b16 %v1338
    %v1426 = vunpack.c.l.b16 %v1339
    %v1427 = vunpack.c.h.b16 %v1339
    %v1428 = vunpack.c.l.b16 %v1340
    %v1429 = vunpack.c.h.b16 %v1340
    %v1430 = vunpack.c.l.b16 %v1341
    %v1431 = vunpack.c.h.b16 %v1341
    %v1432 = vunpack.c.l.b16 %v1342
    %v1433 = vunpack.c.h.b16 %v1342
    %v1434 = vunpack.c.l.b16 %v1343
    %v1435 = vunpack.c.h.b16 %v1343
    %v1436 = vunpack.c.l.b16 %v1344
    %v1437 = vunpack.c.h.b16 %v1344
    %v1438 = vunpack.c.l.b16 %v1345
    %v1439 = vunpack.c.h.b16 %v1345
    %v1440 = vunpack.c.l.b16 %v1346
    %v1441 = vunpack.c.h.b16 %v1346
    %v1442 = vunpack.c.l.b16 %v1347
    %v1443 = vunpack.c.h.b16 %v1347
    %v1444 = vpack.c.b16 %v1382, %v1380
    %v1445 = vpack.c.b16 %v1383, %v1381
    %v1446 = vpack.c.b16 %v1386, %v1384
    %v1447 = vpack.c.b16 %v1387, %v1385
    %v1448 = vpack.c.b16 %v1390, %v1388
    %v1449 = vpack.c.b16 %v1391, %v1389
    %v1450 = vpack.c.b16 %v1394, %v1392
    %v1451 = vpack.c.b16 %v1395, %v1393
    %v1452 = vpack.c.b16 %v1398, %v1396
    %v1453 = vpack.c.b16 %v1399, %v1397
    %v1454 = vpack.c.b16 %v1402, %v1400
    %v1455 = vpack.c.b16 %v1403, %v1401
    %v1456 = vpack.c.b16 %v1406, %v1404
    %v1457 = vpack.c.b16 %v1407, %v1405
    %v1458 = vpack.c.b16 %v1410, %v1408
    %v1459 = vpack.c.b16 %v1411, %v1409
    %v1460 = vpack.c.b16 %v1414, %v1412
    %v1461 = vpack.c.b16 %v1415, %v1413
    %v1462 = vpack.c.b16 %v1418, %v1416
    %v1463 = vpack.c.b16 %v1419, %v1417
    %v1464 = vpack.c.b16 %v1422, %v1420
    %v1465 = vpack.c.b16 %v1423, %v1421
    %v1466 = vpack.c.b16 %v1426, %v1424
    %v1467 = vpack.c.b16 %v1427, %v1425
    %v1468 = vpack.c.b16 %v1430, %v1428
    %v1469 = vpack.c.b16 %v1431, %v1429
    %v1470 = vpack.c.b16 %v1434, %v1432
    %v1471 = vpack.c.b16 %v1435, %v1433
    %v1472 = vpack.c.b16 %v1438, %v1436
    %v1473 = vpack.c.b16 %v1439, %v1437
    %v1474 = vpack.c.b16 %v1442, %v1440
    %v1475 = vpack.c.b16 %v1443, %v1441
    %1508 = vmatprep.subr.bf16.mxu0 %v1459
    %1509 = vmatpush1.bf16.msra.mxu0 %v1458
    %1510 = vmatprep.subr.bf16.mxu0 %v1457
    %1511 = vmatpush1.bf16.msra.mxu0 %v1456
    %1512 = vmatprep.subr.bf16.mxu0 %v1455
    %1513 = vmatpush1.bf16.msra.mxu0 %v1454
    %1514 = vmatprep.subr.bf16.mxu0 %v1453
    %1515 = vmatpush1.bf16.msra.mxu0 %v1452
    %1516 = vmatprep.subr.bf16.mxu0 %v1451
    %1517 = vmatpush1.bf16.msra.mxu0 %v1450
    %1518 = vmatprep.subr.bf16.mxu0 %v1449
    %1519 = vmatpush1.bf16.msra.mxu0 %v1448
    %1520 = vmatprep.subr.bf16.mxu0 %v1447
    %1521 = vmatpush1.bf16.msra.mxu0 %v1446
    %1522 = vmatprep.subr.bf16.mxu0 %v1445
    %1523 = vmatpush1.bf16.msra.mxu0 %v1444
    %1524 = vmatprep.subr.bf16.mxu0 %v1475
    %1525 = vmatpush2.bf16.msra.mxu0 %v1474
    %1526 = vmatprep.subr.bf16.mxu0 %v1473
    %1527 = vmatpush2.bf16.msra.mxu0 %v1472
    %1528 = vmatprep.subr.bf16.mxu0 %v1471
    %1529 = vmatpush2.bf16.msra.mxu0 %v1470
    %1530 = vmatprep.subr.bf16.mxu0 %v1469
    %1531 = vmatpush2.bf16.msra.mxu0 %v1468
    %1532 = vmatprep.subr.bf16.mxu0 %v1467
    %1533 = vmatpush2.bf16.msra.mxu0 %v1466
    %1534 = vmatprep.subr.bf16.mxu0 %v1465
    %1535 = vmatpush2.bf16.msra.mxu0 %v1464
    %1536 = vmatprep.subr.bf16.mxu0 %v1463
    %1537 = vmatpush2.bf16.msra.mxu0 %v1462
    %1538 = vmatprep.subr.bf16.mxu0 %v1461
    %1539 = vmatpush2.bf16.msra.mxu0 %v1460
    %1540 = vmatprep.mubr.bf16.mxu0 %v1313
    %1541 = vmatmul.mubr.bf16.gmra.mxu0 %v1312
    %v1542 = vpop.f32.mrf.mxu0
    %v1543 = vadd.f32 0.0, %v1542
    %v1544 = vpop.f32.mrf.mxu0
    %v1545 = vadd.f32 0.0, %v1544
    %v1546 = vpop.f32.mrf.mxu0
    %v1547 = vadd.f32 0.0, %v1546
    %v1548 = vpop.f32.mrf.mxu0
    %v1549 = vadd.f32 0.0, %v1548
    %1550 = vmatprep.mubr.bf16.mxu0 %v1315
    %1551 = vmatmul.mubr.bf16.gmra.mxu0 %v1314
    %v1552 = vpop.f32.mrf.mxu0
    %v1553 = vadd.f32 0.0, %v1552
    %v1554 = vpop.f32.mrf.mxu0
    %v1555 = vadd.f32 0.0, %v1554
    %v1556 = vpop.f32.mrf.mxu0
    %v1557 = vadd.f32 0.0, %v1556
    %v1558 = vpop.f32.mrf.mxu0
    %v1559 = vadd.f32 0.0, %v1558
    %1560 = vdwg.mxu0
    %v1561 = vadd.f32 %v1207, %v1543
    %v1562 = vadd.f32 %v1208, %v1545
    %v1563 = vadd.f32 %v1209, %v1547
    %v1564 = vadd.f32 %v1210, %v1549
    %v1565 = vadd.f32 %v1211, %v1553
    %v1566 = vadd.f32 %v1212, %v1555
    %v1567 = vadd.f32 %v1213, %v1557
    %v1568 = vadd.f32 %v1214, %v1559
    %v1569 = vld [vmem:[%s4] sm:$0x3]
    %v1571 = vlaneseq
    %v1572 = vshrl.u32 %v1571, 7
    %v1573 = vsub.s32 0, %v1572
    %v1574 = vrot.slane %v1569, %v1573
    %v1575 = vlaneseq
    %v1576 = vshrl.u32 %v1575, 7
    %v1577 = vsub.s32 1, %v1576
    %v1578 = vrot.slane %v1569, %v1577
    %v1581 = vadd.f32 %v1561, %v1574
    %v1582 = vadd.f32 %v1562, %v1578
    %v1583 = vadd.f32 %v1563, %v1574
    %v1584 = vadd.f32 %v1564, %v1578
    %v1585 = vadd.f32 %v1565, %v1574
    %v1586 = vadd.f32 %v1566, %v1578
    %v1587 = vadd.f32 %v1567, %v1574
    %v1588 = vadd.f32 %v1568, %v1578
    %v1589 = vmax.f32 %v1581, 0.0
    %v1590 = vmax.f32 %v1582, 0.0
    %v1591 = vmax.f32 %v1583, 0.0
    %v1592 = vmax.f32 %v1584, 0.0
    %v1593 = vmax.f32 %v1585, 0.0
    %v1594 = vmax.f32 %v1586, 0.0
    %v1595 = vmax.f32 %v1587, 0.0
    %v1596 = vmax.f32 %v1588, 0.0
    %v1597 = vmax.f32 %v1589, %v1591
    %v1598 = vrot.slane %v1597, 4
    %v1599 = vmax.f32 %v1597, %v1598
    %v1600 = vrot.slane %v1599, 2
    %v1601 = vmax.f32 %v1599, %v1600
    %v1602 = vrot.slane %v1601, 1
    %v1603 = vmax.f32 %v1601, %v1602
    %v1604 = vmax.f32 %v1590, %v1592
    %v1605 = vrot.slane %v1604, 4
    %v1606 = vmax.f32 %v1604, %v1605
    %v1607 = vrot.slane %v1606, 2
    %v1608 = vmax.f32 %v1606, %v1607
    %v1609 = vrot.slane %v1608, 1
    %v1610 = vmax.f32 %v1608, %v1609
    %v1611 = vmax.f32 %v1593, %v1595
    %v1612 = vrot.slane %v1611, 4
    %v1613 = vmax.f32 %v1611, %v1612
    %v1614 = vrot.slane %v1613, 2
    %v1615 = vmax.f32 %v1613, %v1614
    %v1616 = vrot.slane %v1615, 1
    %v1617 = vmax.f32 %v1615, %v1616
    %v1618 = vmax.f32 %v1594, %v1596
    %v1619 = vrot.slane %v1618, 4
    %v1620 = vmax.f32 %v1618, %v1619
    %v1621 = vrot.slane %v1620, 2
    %v1622 = vmax.f32 %v1620, %v1621
    %v1623 = vrot.slane %v1622, 1
    %v1624 = vmax.f32 %v1622, %v1623
    %v1625 = vpack.c.bf16 %v1603, %v1603
    %v1626 = vpack.c.bf16 %v1610, %v1610
    %v1627 = vpack.c.bf16 %v1617, %v1617
    %v1628 = vpack.c.bf16 %v1624, %v1624
    %v1629 = vld [vmem:[#allocation7] sm:$0xff]
    %v1630 = vld [vmem:[#allocation7 + $0x8] sm:$0xff]
    %v1631 = vld [vmem:[#allocation7 + $0x10] sm:$0xff]
    %v1632 = vld [vmem:[#allocation7 + $0x18] sm:$0xff]
    %v1633 = vld [vmem:[#allocation7 + $0x20] sm:$0xff]
    %v1634 = vld [vmem:[#allocation7 + $0x28] sm:$0xff]
    %v1635 = vld [vmem:[#allocation7 + $0x30] sm:$0xff]
    %v1636 = vld [vmem:[#allocation7 + $0x38] sm:$0xff]
    %v1637 = vld [vmem:[#allocation7 + $0x40] sm:$0xff]
    %v1638 = vld [vmem:[#allocation7 + $0x48] sm:$0xff]
    %v1639 = vld [vmem:[#allocation7 + $0x50] sm:$0xff]
    %v1640 = vld [vmem:[#allocation7 + $0x58] sm:$0xff]
    %v1641 = vld [vmem:[#allocation7 + $0x60] sm:$0xff]
    %v1642 = vld [vmem:[#allocation7 + $0x68] sm:$0xff]
    %v1643 = vld [vmem:[#allocation7 + $0x70] sm:$0xff]
    %v1644 = vld [vmem:[#allocation7 + $0x78] sm:$0xff]
    %v1645 = vld [vmem:[#allocation7 + $0x80] sm:$0xff]
    %v1646 = vld [vmem:[#allocation7 + $0x88] sm:$0xff]
    %v1647 = vld [vmem:[#allocation7 + $0x90] sm:$0xff]
    %v1648 = vld [vmem:[#allocation7 + $0x98] sm:$0xff]
    %v1649 = vld [vmem:[#allocation7 + $0xa0] sm:$0xff]
    %v1650 = vld [vmem:[#allocation7 + $0xa8] sm:$0xff]
    %v1651 = vld [vmem:[#allocation7 + $0xb0] sm:$0xff]
    %v1652 = vld [vmem:[#allocation7 + $0xb8] sm:$0xff]
    %v1653 = vld [vmem:[#allocation7 + $0xc0] sm:$0xff]
    %v1654 = vld [vmem:[#allocation7 + $0xc8] sm:$0xff]
    %v1655 = vld [vmem:[#allocation7 + $0xd0] sm:$0xff]
    %v1656 = vld [vmem:[#allocation7 + $0xd8] sm:$0xff]
    %v1657 = vld [vmem:[#allocation7 + $0xe0] sm:$0xff]
    %v1658 = vld [vmem:[#allocation7 + $0xe8] sm:$0xff]
    %v1659 = vld [vmem:[#allocation7 + $0xf0] sm:$0xff]
    %v1660 = vld [vmem:[#allocation7 + $0xf8] sm:$0xff]
    %v1661 = vld [vmem:[%s6] sm:$0x3]
    %v1663 = vlaneseq
    %v1664 = vshrl.u32 %v1663, 7
    %v1665 = vsub.s32 0, %v1664
    %v1666 = vrot.slane %v1661, %v1665
    %v1667 = vlaneseq
    %v1668 = vshrl.u32 %v1667, 7
    %v1669 = vsub.s32 1, %v1668
    %v1670 = vrot.slane %v1661, %v1669
    %v1677 = vunpack.c.l.b16 %v1625
    %v1678 = vunpack.c.l.b16 %v1626
    %v1679 = vunpack.c.l.b16 %v1627
    %v1680 = vunpack.c.l.b16 %v1628
    %vm1681 = vcmask 1041409
    %v1682 = vsel %vm1681, %v1679, %v1677
    %v1683 = vsel %vm1681, %v1680, %v1678
    %v1684 = vpack.c.b16 %v1682, %v1682
    %v1685 = vpack.c.b16 %v1683, %v1683
    %v1720 = vunpack.c.l.b16 %v1629
    %v1721 = vunpack.c.h.b16 %v1629
    %v1722 = vunpack.c.l.b16 %v1630
    %v1723 = vunpack.c.h.b16 %v1630
    %v1724 = vunpack.c.l.b16 %v1631
    %v1725 = vunpack.c.h.b16 %v1631
    %v1726 = vunpack.c.l.b16 %v1632
    %v1727 = vunpack.c.h.b16 %v1632
    %v1728 = vunpack.c.l.b16 %v1633
    %v1729 = vunpack.c.h.b16 %v1633
    %v1730 = vunpack.c.l.b16 %v1634
    %v1731 = vunpack.c.h.b16 %v1634
    %v1732 = vunpack.c.l.b16 %v1635
    %v1733 = vunpack.c.h.b16 %v1635
    %v1734 = vunpack.c.l.b16 %v1636
    %v1735 = vunpack.c.h.b16 %v1636
    %v1736 = vunpack.c.l.b16 %v1637
    %v1737 = vunpack.c.h.b16 %v1637
    %v1738 = vunpack.c.l.b16 %v1638
    %v1739 = vunpack.c.h.b16 %v1638
    %v1740 = vunpack.c.l.b16 %v1639
    %v1741 = vunpack.c.h.b16 %v1639
    %v1742 = vunpack.c.l.b16 %v1640
    %v1743 = vunpack.c.h.b16 %v1640
    %v1744 = vunpack.c.l.b16 %v1641
    %v1745 = vunpack.c.h.b16 %v1641
    %v1746 = vunpack.c.l.b16 %v1642
    %v1747 = vunpack.c.h.b16 %v1642
    %v1748 = vunpack.c.l.b16 %v1643
    %v1749 = vunpack.c.h.b16 %v1643
    %v1750 = vunpack.c.l.b16 %v1644
    %v1751 = vunpack.c.h.b16 %v1644
    %v1752 = vunpack.c.l.b16 %v1645
    %v1753 = vunpack.c.h.b16 %v1645
    %v1754 = vunpack.c.l.b16 %v1646
    %v1755 = vunpack.c.h.b16 %v1646
    %v1756 = vunpack.c.l.b16 %v1647
    %v1757 = vunpack.c.h.b16 %v1647
    %v1758 = vunpack.c.l.b16 %v1648
    %v1759 = vunpack.c.h.b16 %v1648
    %v1760 = vunpack.c.l.b16 %v1649
    %v1761 = vunpack.c.h.b16 %v1649
    %v1762 = vunpack.c.l.b16 %v1650
    %v1763 = vunpack.c.h.b16 %v1650
    %v1764 = vunpack.c.l.b16 %v1651
    %v1765 = vunpack.c.h.b16 %v1651
    %v1766 = vunpack.c.l.b16 %v1652
    %v1767 = vunpack.c.h.b16 %v1652
    %v1768 = vunpack.c.l.b16 %v1653
    %v1769 = vunpack.c.h.b16 %v1653
    %v1770 = vunpack.c.l.b16 %v1654
    %v1771 = vunpack.c.h.b16 %v1654
    %v1772 = vunpack.c.l.b16 %v1655
    %v1773 = vunpack.c.h.b16 %v1655
    %v1774 = vunpack.c.l.b16 %v1656
    %v1775 = vunpack.c.h.b16 %v1656
    %v1776 = vunpack.c.l.b16 %v1657
    %v1777 = vunpack.c.h.b16 %v1657
    %v1778 = vunpack.c.l.b16 %v1658
    %v1779 = vunpack.c.h.b16 %v1658
    %v1780 = vunpack.c.l.b16 %v1659
    %v1781 = vunpack.c.h.b16 %v1659
    %v1782 = vunpack.c.l.b16 %v1660
    %v1783 = vunpack.c.h.b16 %v1660
    %v1784 = vpack.c.b16 %v1722, %v1720
    %v1785 = vpack.c.b16 %v1723, %v1721
    %v1786 = vpack.c.b16 %v1726, %v1724
    %v1787 = vpack.c.b16 %v1727, %v1725
    %v1788 = vpack.c.b16 %v1730, %v1728
    %v1789 = vpack.c.b16 %v1731, %v1729
    %v1790 = vpack.c.b16 %v1734, %v1732
    %v1791 = vpack.c.b16 %v1735, %v1733
    %v1792 = vpack.c.b16 %v1738, %v1736
    %v1793 = vpack.c.b16 %v1739, %v1737
    %v1794 = vpack.c.b16 %v1742, %v1740
    %v1795 = vpack.c.b16 %v1743, %v1741
    %v1796 = vpack.c.b16 %v1746, %v1744
    %v1797 = vpack.c.b16 %v1747, %v1745
    %v1798 = vpack.c.b16 %v1750, %v1748
    %v1799 = vpack.c.b16 %v1751, %v1749
    %v1800 = vpack.c.b16 %v1754, %v1752
    %v1801 = vpack.c.b16 %v1755, %v1753
    %v1802 = vpack.c.b16 %v1758, %v1756
    %v1803 = vpack.c.b16 %v1759, %v1757
    %v1804 = vpack.c.b16 %v1762, %v1760
    %v1805 = vpack.c.b16 %v1763, %v1761
    %v1806 = vpack.c.b16 %v1766, %v1764
    %v1807 = vpack.c.b16 %v1767, %v1765
    %v1808 = vpack.c.b16 %v1770, %v1768
    %v1809 = vpack.c.b16 %v1771, %v1769
    %v1810 = vpack.c.b16 %v1774, %v1772
    %v1811 = vpack.c.b16 %v1775, %v1773
    %v1812 = vpack.c.b16 %v1778, %v1776
    %v1813 = vpack.c.b16 %v1779, %v1777
    %v1814 = vpack.c.b16 %v1782, %v1780
    %v1815 = vpack.c.b16 %v1783, %v1781
    %1848 = vmatprep.subr.bf16.mxu0 %v1799
    %1849 = vmatpush1.bf16.msra.mxu0 %v1798
    %1850 = vmatprep.subr.bf16.mxu0 %v1797
    %1851 = vmatpush1.bf16.msra.mxu0 %v1796
    %1852 = vmatprep.subr.bf16.mxu0 %v1795
    %1853 = vmatpush1.bf16.msra.mxu0 %v1794
    %1854 = vmatprep.subr.bf16.mxu0 %v1793
    %1855 = vmatpush1.bf16.msra.mxu0 %v1792
    %1856 = vmatprep.subr.bf16.mxu0 %v1791
    %1857 = vmatpush1.bf16.msra.mxu0 %v1790
    %1858 = vmatprep.subr.bf16.mxu0 %v1789
    %1859 = vmatpush1.bf16.msra.mxu0 %v1788
    %1860 = vmatprep.subr.bf16.mxu0 %v1787
    %1861 = vmatpush1.bf16.msra.mxu0 %v1786
    %1862 = vmatprep.subr.bf16.mxu0 %v1785
    %1863 = vmatpush1.bf16.msra.mxu0 %v1784
    %1864 = vmatprep.subr.bf16.mxu0 %v1815
    %1865 = vmatpush2.bf16.msra.mxu0 %v1814
    %1866 = vmatprep.subr.bf16.mxu0 %v1813
    %1867 = vmatpush2.bf16.msra.mxu0 %v1812
    %1868 = vmatprep.subr.bf16.mxu0 %v1811
    %1869 = vmatpush2.bf16.msra.mxu0 %v1810
    %1870 = vmatprep.subr.bf16.mxu0 %v1809
    %1871 = vmatpush2.bf16.msra.mxu0 %v1808
    %1872 = vmatprep.subr.bf16.mxu0 %v1807
    %1873 = vmatpush2.bf16.msra.mxu0 %v1806
    %1874 = vmatprep.subr.bf16.mxu0 %v1805
    %1875 = vmatpush2.bf16.msra.mxu0 %v1804
    %1876 = vmatprep.subr.bf16.mxu0 %v1803
    %1877 = vmatpush2.bf16.msra.mxu0 %v1802
    %1878 = vmatprep.subr.bf16.mxu0 %v1801
    %1879 = vmatpush2.bf16.msra.mxu0 %v1800
    %1880 = vmatprep.mubr.bf16.mxu0 %v1685
    %1881 = vmatmul.mubr.bf16.gmra.mxu0 %v1684
    %v1882 = vpop.f32.mrf.mxu0
    %v1883 = vadd.f32 %v1666, %v1882
    %v1884 = vpop.f32.mrf.mxu0
    %v1885 = vadd.f32 %v1670, %v1884
    %v1886 = vpop.f32.mrf.mxu0
    %v1887 = vpop.f32.mrf.mxu0
    %1888 = vdwg.mxu0
    %v1889 = vmax.f32 %v1883, 0.0
    %v1890 = vmax.f32 %v1885, 0.0
    %v1891 = vpack.c.bf16 %v1889, %v1889
    %v1892 = vpack.c.bf16 %v1890, %v1890
    %v1893 = vld [vmem:[#allocation9] sm:$0xf]
    %v1894 = vld [vmem:[#allocation9 + $0x4] sm:$0xf]
    %v1895 = vld [vmem:[#allocation9 + $0x8] sm:$0xf]
    %v1896 = vld [vmem:[#allocation9 + $0xc] sm:$0xf]
    %v1897 = vld [vmem:[#allocation9 + $0x10] sm:$0xf]
    %v1898 = vld [vmem:[#allocation9 + $0x14] sm:$0xf]
    %v1899 = vld [vmem:[#allocation9 + $0x18] sm:$0xf]
    %v1900 = vld [vmem:[#allocation9 + $0x1c] sm:$0xf]
    %v1901 = vld [vmem:[#allocation9 + $0x20] sm:$0xf]
    %v1902 = vld [vmem:[#allocation9 + $0x24] sm:$0xf]
    %v1903 = vld [vmem:[#allocation9 + $0x28] sm:$0xf]
    %v1904 = vld [vmem:[#allocation9 + $0x2c] sm:$0xf]
    %v1905 = vld [vmem:[#allocation9 + $0x30] sm:$0xf]
    %v1906 = vld [vmem:[#allocation9 + $0x34] sm:$0xf]
    %v1907 = vld [vmem:[#allocation9 + $0x38] sm:$0xf]
    %v1908 = vld [vmem:[#allocation9 + $0x3c] sm:$0xf]
    %v1909 = vld [vmem:[#allocation9 + $0x40] sm:$0xf]
    %v1910 = vld [vmem:[#allocation9 + $0x44] sm:$0xf]
    %v1911 = vld [vmem:[#allocation9 + $0x48] sm:$0xf]
    %v1912 = vld [vmem:[#allocation9 + $0x4c] sm:$0xf]
    %v1913 = vld [vmem:[#allocation9 + $0x50] sm:$0xf]
    %v1914 = vld [vmem:[#allocation9 + $0x54] sm:$0xf]
    %v1915 = vld [vmem:[#allocation9 + $0x58] sm:$0xf]
    %v1916 = vld [vmem:[#allocation9 + $0x5c] sm:$0xf]
    %v1917 = vld [vmem:[#allocation9 + $0x60] sm:$0xf]
    %v1918 = vld [vmem:[#allocation9 + $0x64] sm:$0xf]
    %v1919 = vld [vmem:[#allocation9 + $0x68] sm:$0xf]
    %v1920 = vld [vmem:[#allocation9 + $0x6c] sm:$0xf]
    %v1921 = vld [vmem:[#allocation9 + $0x70] sm:$0xf]
    %v1922 = vld [vmem:[#allocation9 + $0x74] sm:$0xf]
    %v1923 = vld [vmem:[#allocation9 + $0x78] sm:$0xf]
    %v1924 = vld [vmem:[#allocation9 + $0x7c] sm:$0xf]
    %v1925 = vld [vmem:[%s8] sm:$0x1]
    %v1927 = vlaneseq
    %v1928 = vshrl.u32 %v1927, 7
    %v1929 = vsub.s32 0, %v1928
    %v1930 = vrot.slane %v1925, %v1929
    %v1964 = vunpack.c.l.b16 %v1893
    %v1965 = vunpack.c.l.b16 %v1894
    %v1966 = vunpack.c.l.b16 %v1895
    %v1967 = vunpack.c.l.b16 %v1896
    %v1968 = vunpack.c.l.b16 %v1897
    %v1969 = vunpack.c.l.b16 %v1898
    %v1970 = vunpack.c.l.b16 %v1899
    %v1971 = vunpack.c.l.b16 %v1900
    %v1972 = vunpack.c.l.b16 %v1901
    %v1973 = vunpack.c.l.b16 %v1902
    %v1974 = vunpack.c.l.b16 %v1903
    %v1975 = vunpack.c.l.b16 %v1904
    %v1976 = vunpack.c.l.b16 %v1905
    %v1977 = vunpack.c.l.b16 %v1906
    %v1978 = vunpack.c.l.b16 %v1907
    %v1979 = vunpack.c.l.b16 %v1908
    %v1980 = vunpack.c.l.b16 %v1909
    %v1981 = vunpack.c.l.b16 %v1910
    %v1982 = vunpack.c.l.b16 %v1911
    %v1983 = vunpack.c.l.b16 %v1912
    %v1984 = vunpack.c.l.b16 %v1913
    %v1985 = vunpack.c.l.b16 %v1914
    %v1986 = vunpack.c.l.b16 %v1915
    %v1987 = vunpack.c.l.b16 %v1916
    %v1988 = vunpack.c.l.b16 %v1917
    %v1989 = vunpack.c.l.b16 %v1918
    %v1990 = vunpack.c.l.b16 %v1919
    %v1991 = vunpack.c.l.b16 %v1920
    %v1992 = vunpack.c.l.b16 %v1921
    %v1993 = vunpack.c.l.b16 %v1922
    %v1994 = vunpack.c.l.b16 %v1923
    %v1995 = vunpack.c.l.b16 %v1924
    %v1996 = vpack.c.b16 %v1965, %v1964
    %v1997 = vpack.c.b16 %v1967, %v1966
    %v1998 = vpack.c.b16 %v1969, %v1968
    %v1999 = vpack.c.b16 %v1971, %v1970
    %v2000 = vpack.c.b16 %v1973, %v1972
    %v2001 = vpack.c.b16 %v1975, %v1974
    %v2002 = vpack.c.b16 %v1977, %v1976
    %v2003 = vpack.c.b16 %v1979, %v1978
    %v2004 = vpack.c.b16 %v1981, %v1980
    %v2005 = vpack.c.b16 %v1983, %v1982
    %v2006 = vpack.c.b16 %v1985, %v1984
    %v2007 = vpack.c.b16 %v1987, %v1986
    %v2008 = vpack.c.b16 %v1989, %v1988
    %v2009 = vpack.c.b16 %v1991, %v1990
    %v2010 = vpack.c.b16 %v1993, %v1992
    %v2011 = vpack.c.b16 %v1995, %v1994
    %2028 = vmatprep.subr.bf16.mxu0 0
    %2029 = vmatpush1.bf16.msra.mxu0 %v2003
    %2030 = vmatprep.subr.bf16.mxu0 0
    %2031 = vmatpush1.bf16.msra.mxu0 %v2002
    %2032 = vmatprep.subr.bf16.mxu0 0
    %2033 = vmatpush1.bf16.msra.mxu0 %v2001
    %2034 = vmatprep.subr.bf16.mxu0 0
    %2035 = vmatpush1.bf16.msra.mxu0 %v2000
    %2036 = vmatprep.subr.bf16.mxu0 0
    %2037 = vmatpush1.bf16.msra.mxu0 %v1999
    %2038 = vmatprep.subr.bf16.mxu0 0
    %2039 = vmatpush1.bf16.msra.mxu0 %v1998
    %2040 = vmatprep.subr.bf16.mxu0 0
    %2041 = vmatpush1.bf16.msra.mxu0 %v1997
    %2042 = vmatprep.subr.bf16.mxu0 0
    %2043 = vmatpush1.bf16.msra.mxu0 %v1996
    %2044 = vmatprep.subr.bf16.mxu0 0
    %2045 = vmatpush2.bf16.msra.mxu0 %v2011
    %2046 = vmatprep.subr.bf16.mxu0 0
    %2047 = vmatpush2.bf16.msra.mxu0 %v2010
    %2048 = vmatprep.subr.bf16.mxu0 0
    %2049 = vmatpush2.bf16.msra.mxu0 %v2009
    %2050 = vmatprep.subr.bf16.mxu0 0
    %2051 = vmatpush2.bf16.msra.mxu0 %v2008
    %2052 = vmatprep.subr.bf16.mxu0 0
    %2053 = vmatpush2.bf16.msra.mxu0 %v2007
    %2054 = vmatprep.subr.bf16.mxu0 0
    %2055 = vmatpush2.bf16.msra.mxu0 %v2006
    %2056 = vmatprep.subr.bf16.mxu0 0
    %2057 = vmatpush2.bf16.msra.mxu0 %v2005
    %2058 = vmatprep.subr.bf16.mxu0 0
    %2059 = vmatpush2.bf16.msra.mxu0 %v2004
    %2060 = vmatprep.mubr.bf16.mxu0 %v1892
    %2061 = vmatmul.mubr.bf16.gmra.mxu0 %v1891
    %v2062 = vpop.f32.mrf.mxu0
    %v2063 = vadd.f32 %v1930, %v2062
    %v2064 = vpop.f32.mrf.mxu0
    %v2065 = vpop.f32.mrf.mxu0
    %v2066 = vpop.f32.mrf.mxu0
    %2067 = vdwg.mxu0
    %2068 = vst [vmem:[#allocation10] sm:$0x3] %v2063
    // Predicated region
    $region50: #{rot_green_forward.1} parent=1 // pred_check
      _
    $region51: #{rot_green_forward.1} parent=1 // pred_check_branch
      %2070 = sbr.rel (0) target = $region53
    $region52: #{rot_green_forward.1} parent=1 // pred_region
      %s2072 = ssub.s32 32, 32
      %2073 = vsyncadd [#allocation6], %s2072
      %s2075 = sshll.u32 [#allocation10], 4
      %s2076 = int_to_ptr.vmem [resolvable:$true] %s2075
      %2078 = dma.vmem_to_hbm [thread:$0]  %s2076, 32, %s9, [#allocation6]
    $region53: #{rot_green_forward.1} parent=1 // pred_fallthru
      _
    // Predicated region
    $region54: #{rot_green_forward.1} parent=1 // pred_check
      _
    $region55: #{rot_green_forward.1} parent=1 // pred_check_branch
      %2080 = sbr.rel (0) target = $region57
    $region56: #{rot_green_forward.1} parent=1 // pred_region
      %2081 = dma.done [#allocation6], 32
    $region57: #{rot_green_forward.1} parent=1 // pred_fallthru
      _
    %2082 = vsyncpa [#allocation5], 1
    %2083 = vsyncpa [#allocation8], 1
    %2084 = vsyncpa [#allocation6], 1
  %2085 = vsyncmov [#allocation3]
  %s2086 = vpop.sfrf %2085
  %p2087 = scmp.eq.s32.totalorder %s2086, 0
  %p2088 = pneg %p2087
  %2090 = shalt.err (%p2088)

</llo_original>
